<compile_context>
chip_gen: v7x
topology: tpu7x:2x2x1
jax: 0.10.0
libtpu: 0.0.40
codegen_flags: <defaults>
</compile_context>

<pallas_src>
import functools

import jax
import jax.numpy as jnp
from jax.experimental import pallas as pl
from jax.experimental.pallas import tpu as pltpu

_LANE = 128
_FAST_PATH_MAX_BYTES = 256 * 1024   # below this, XLA fusion beats a pallas_call launch
_TM_TARGET_BYTES = 4 << 20          # ~4 MiB (VMEM-padded) x tile: ~85% of HBM roofline
_MAX_TILE_BYTES = 8 << 20           # keep 2 in-flight x buffers well under v7x's VMEM


def _loglinear_kernel(x_ref, w_ref, b_ref, o_ref, *, r, apply_sigmoid):
    # x_ref: (TM, D) VMEM in x's native dtype; w_ref: (1, D) f32 VMEM;
    # b_ref: (1, 1) f32 SMEM; o_ref: (1, R, 128) f32 VMEM, with TM = R * 128.
    tm, d = x_ref.shape
    xf = x_ref[...].astype(jnp.float32)            # in-vreg upcast (v5e: no bf16 VALU)
    p = (xf * w_ref[...]).reshape(r, _LANE, d)     # split sublane dim: layout-trivial
    logits = jnp.sum(p, axis=-1) + b_ref[0, 0]     # (R, 128) lane-dense result (XLU reduce)
    if apply_sigmoid:
        logits = jax.nn.sigmoid(logits)            # EUP slot — effectively free
    o_ref[...] = logits[None].astype(o_ref.dtype)


def _loglinear_call(x, weight, bias, *, apply_sigmoid, force_kernel=False):
    """x: (B, D) (f32 or bf16), weight: (1, D) or (D,), bias: (1,) or () -> (B, 1) f32."""
    B, D = x.shape
    weight = jnp.asarray(weight, jnp.float32).reshape(1, D)
    bias2 = jnp.asarray(bias, jnp.float32).reshape(1, 1)

    itemsize = jnp.dtype(x.dtype).itemsize
    padded_row_bytes = pl.cdiv(D, _LANE) * _LANE * itemsize  # VMEM lane padding for D < 128

    use_kernel = force_kernel or (B * D * itemsize > _FAST_PATH_MAX_BYTES)
    if B < _LANE or _LANE * padded_row_bytes > _MAX_TILE_BYTES:
        # Too few rows for a lane-dense tile, or a single 128-row tile already blows the
        # VMEM budget; XLA fusion handles both cases fine.
        # TODO(synk): for very large D, tile the reduction over D with a VMEM accumulator.
        use_kernel = False

    if not use_kernel:
        logits = jnp.sum(x.astype(jnp.float32) * weight, axis=-1, keepdims=True) + bias2
        return jax.nn.sigmoid(logits) if apply_sigmoid else logits

    # Auto-scale the batch tile: ~_TM_TARGET_BYTES of (padded) VMEM per x tile, a multiple
    # of 128 so the logits column becomes a lane-dense (R, 128) block, and never (much)
    # larger than B itself. The ragged last block covers the remainder — no padded x copy.
    tm = max((_TM_TARGET_BYTES // padded_row_bytes) // _LANE * _LANE, _LANE)
    tm = min(tm, max((B // _LANE) * _LANE, _LANE))
    r = tm // _LANE
    num_tiles = pl.cdiv(B, tm)

    # Explicit VMEM budget: 2 pipeline buffers for x and out tiles, resident weight, slack.
    vmem_needed = 2 * (tm * padded_row_bytes + tm * 4) + 2 * padded_row_bytes + (4 << 20)
    vmem_limit = int(min(max(vmem_needed, 16 << 20), 48 << 20))

    out = pl.pallas_call(
        functools.partial(_loglinear_kernel, r=r, apply_sigmoid=apply_sigmoid),
        out_shape=jax.ShapeDtypeStruct((num_tiles, r, _LANE), jnp.float32),
        grid=(num_tiles,),
        in_specs=[
            pl.BlockSpec((tm, D), lambda i: (i, 0)),            # x tile (pipelined, native dtype)
            pl.BlockSpec((1, D), lambda i: (0, 0)),             # weight (resident, f32)
            pl.BlockSpec(memory_space=pltpu.MemorySpace.SMEM),  # bias scalar in SMEM
        ],
        out_specs=pl.BlockSpec((1, r, _LANE), lambda i: (i, 0, 0)),
        compiler_params=pltpu.CompilerParams(
            # On v7x, pltpu.CORE_PARALLEL would shard the batch loop over both
            # TensorCores; "parallel" is the portable choice for single-TC v5e/v6e.
            dimension_semantics=("parallel",),
            vmem_limit_bytes=vmem_limit,
        ),
        cost_estimate=pl.CostEstimate(
            flops=2 * B * D,
            transcendentals=B if apply_sigmoid else 0,
            bytes_accessed=B * D * itemsize + B * 4 + D * 4,
        ),
    )(x, weight, bias2)

    # Lane-dense (num_tiles, R, 128) slab -> (B, 1); drops garbage rows from the ragged
    # last input block. The slab is only 4 B per row, so this reshape is negligible.
    return out.reshape(num_tiles * tm)[:B].reshape(B, 1)


def loglinear_forward(x, weight, bias, *, force_kernel=False):
    """Equivalent of LogLinear.forward: x @ W.T + b -> (B, 1)."""
    return _loglinear_call(x, weight, bias, apply_sigmoid=False, force_kernel=force_kernel)


def loglinear_predict(x, weight, bias, *, force_kernel=False):
    """Equivalent of LogLinear.predict: sigmoid(forward(x)), fused in-kernel."""
    return _loglinear_call(x, weight, bias, apply_sigmoid=True, force_kernel=force_kernel)


if __name__ == "__main__":
    D = 32  # embedding_dim
    key = jax.random.PRNGKey(0)
    kx, kw, kb, kx2 = jax.random.split(key, 4)

    # Deterministic nn.Linear-style init: U(-1/sqrt(D), 1/sqrt(D)).
    bound = 1.0 / jnp.sqrt(jnp.float32(D))
    weight = jax.random.uniform(kw, (1, D), minval=-bound, maxval=bound, dtype=jnp.float32)
    bias = jax.random.uniform(kb, (1,), minval=-bound, maxval=bound, dtype=jnp.float32)

    def ref_forward(xv):
        return jnp.sum(xv.astype(jnp.float32) * weight, axis=-1, keepdims=True) + bias

    # 1) Module-scale demo (batch=8): tiny workload -> fused jnp fast path.
    B = 8
    x = jax.random.normal(kx, (B, D), dtype=jnp.float32)
    out = jax.block_until_ready(loglinear_forward(x, weight, bias))
    assert out.shape == (B, 1)
    assert jnp.allclose(out, ref_forward(x), atol=1e-5, rtol=1e-5)
    probs = jax.block_until_ready(loglinear_predict(x, weight, bias))
    assert probs.shape == (B, 1)
    assert jnp.allclose(probs, jax.nn.sigmoid(ref_forward(x)), atol=1e-5, rtol=1e-5)

    # 2) Pallas kernel path: ragged batch (not a multiple of the tile), lane-dense output.
    B2 = 2051
    x2 = jax.random.normal(kx2, (B2, D), dtype=jnp.float32)
    out2 = jax.block_until_ready(loglinear_forward(x2, weight, bias, force_kernel=True))
    assert out2.shape == (B2, 1)
    assert jnp.allclose(out2, ref_forward(x2), atol=1e-5, rtol=1e-5)

    probs2 = jax.block_until_ready(loglinear_predict(x2, weight, bias, force_kernel=True))
    assert probs2.shape == (B2, 1)
    assert jnp.allclose(probs2, jax.nn.sigmoid(ref_forward(x2)), atol=1e-5, rtol=1e-5)

    # 3) bf16 inputs read natively by the kernel (halved HBM traffic), f32 accumulation.
    x2_bf = x2.astype(jnp.bfloat16)
    out3 = jax.block_until_ready(loglinear_forward(x2_bf, weight, bias, force_kernel=True))
    assert out3.shape == (B2, 1)
    assert jnp.allclose(out3, ref_forward(x2_bf), atol=1e-4, rtol=1e-4)

    print("KERNEL_OK")
</pallas_src>

<mosaic_0001>
module attributes {stable_mosaic.version = 11 : i64} {
  func.func @_loglinear_kernel(%arg0: i32, %arg1: memref<2048x32xf32, #tpu.memory_space<vmem>>, %arg2: memref<1x32xf32, #tpu.memory_space<vmem>>, %arg3: memref<1x1xf32, #tpu.memory_space<smem>>, %arg4: memref<1x16x128xf32, #tpu.memory_space<vmem>>) attributes {dimension_semantics = [#tpu.dimension_semantics<parallel>], iteration_bounds = array<i64: 2>, scalar_prefetch = 0 : i64, scratch_operands = 0 : i64, tpu.core_type = #tpu.core_type<tc>, window_params = [{transform_indices = @transform_0, window_bounds = array<i64: 2048, 32>}, {pipeline_mode = #tpu.pipeline_mode<synchronous>, transform_indices = @transform_1, window_bounds = array<i64: 1, 32>}, {transform_indices = @transform_2, window_bounds = array<i64: 1, 1>}, {transform_indices = @transform_3, window_bounds = array<i64: 1, 16, 128>}]} {
    %c0 = arith.constant 0 : index
    %c0_0 = arith.constant 0 : index
    %0 = vector.load %arg1[%c0, %c0_0] : memref<2048x32xf32, #tpu.memory_space<vmem>>, vector<2048x32xf32>
    %c0_1 = arith.constant 0 : index
    %c0_2 = arith.constant 0 : index
    %1 = vector.load %arg2[%c0_1, %c0_2] : memref<1x32xf32, #tpu.memory_space<vmem>>, vector<1x32xf32>
    %2 = vector.broadcast %1 : vector<1x32xf32> to vector<2048x32xf32>
    %3 = arith.mulf %0, %2 : vector<2048x32xf32>
    %4 = vector.shape_cast %3 : vector<2048x32xf32> to vector<16x128x32xf32>
    %cst = arith.constant dense<0.000000e+00> : vector<16x128xf32>
    %5 = vector.multi_reduction <add>, %4, %cst [2] : vector<16x128x32xf32> to vector<16x128xf32>
    %c0_3 = arith.constant 0 : index
    %c0_4 = arith.constant 0 : index
    %6 = memref.load %arg3[%c0_3, %c0_4] : memref<1x1xf32, #tpu.memory_space<smem>>
    %7 = vector.broadcast %6 : f32 to vector<16x128xf32>
    %8 = arith.addf %5, %7 : vector<16x128xf32>
    %9 = vector.shape_cast %8 : vector<16x128xf32> to vector<1x16x128xf32>
    %c0_5 = arith.constant 0 : index
    %c0_6 = arith.constant 0 : index
    %c0_7 = arith.constant 0 : index
    %10 = vector.load %arg4[%c0_5, %c0_6, %c0_7] : memref<1x16x128xf32, #tpu.memory_space<vmem>>, vector<1x16x128xf32>
    tpu.vector_store %arg4[%c0_5, %c0_6, %c0_7], %9 {strides = array<i32>} : memref<1x16x128xf32, #tpu.memory_space<vmem>>, vector<1x16x128xf32>,
    return
  }
  func.func @transform_0(%arg0: i32) -> (i32, i32) {
    %c0_i32 = arith.constant 0 : i32
    %c0_i32_0 = arith.constant 0 : i32
    return %arg0, %c0_i32 : i32, i32
  }
  func.func @transform_1(%arg0: i32) -> (i32, i32) {
    %c0_i32 = arith.constant 0 : i32
    %c0_i32_0 = arith.constant 0 : i32
    %c0_i32_1 = arith.constant 0 : i32
    return %c0_i32, %c0_i32_0 : i32, i32
  }
  func.func @transform_2(%arg0: i32) -> (i32, i32) {
    %c0_i32 = arith.constant 0 : i32
    %c0_i32_0 = arith.constant 0 : i32
    %c0_i32_1 = arith.constant 0 : i32
    return %c0_i32, %c0_i32_0 : i32, i32
  }
  func.func @transform_3(%arg0: i32) -> (i32, i32, i32) {
    %c0_i32 = arith.constant 0 : i32
    %c0_i32_0 = arith.constant 0 : i32
    %c0_i32_1 = arith.constant 0 : i32
    return %arg0, %c0_i32, %c0_i32_0 : i32, i32, i32
  }
}

</mosaic_0001>

<llo_original>
// kernel: tpu_custom_call.1
$region0: #{tpu_custom_call.1}
  #allocation0 [shape = 'u32[]', space=smem, size = 0x4, offset = 0x4, fixed_abs, tag = 'smem constant byte address 0x4 - core index']
  #allocation1 [shape = 'u32[144,128]{1,0:T(1,128)}', space=vmem, size = 0x12000, scoped, tag = 'internal scratch']
  #allocation2 [shape = 'f32[1,1]{1,0:T(1,128)S(6)}', space=smem, size = 0x200, scoped, tag = 'scoped memory for tpu_custom_call.1']
  %s0 = inlined_call_operand.vmem [shape: f32[2051,32], index: 0, kind: input, shape index: {}]
  %s1 = inlined_call_operand.vmem [shape: f32[1,32], index: 1, kind: input, shape index: {}]
  %s2 = inlined_call_operand.<no memory space> [shape: f32[1,1], index: 2, kind: input, shape index: {}]
  %s3 = inlined_call_operand.hbm [shape: f32[2,16,128], index: 3, kind: output, shape index: {}]
  %s4 = sld [smem:[#allocation0]]
  $region45: #{tpu_custom_call.1} parent=0
    _
  %s6 = ssub.s32 1, %s4
  %s7 = scalar_select 0, %s6, %s4
  %8 = sst [smem:[#allocation2]] %s2
  $region1: #{tpu_custom_call.1} parent=0
    #allocation3 [shape = 'u8[16384]{0}', space=vmem, size = 0x4000, scoped, tag = 'output window, operand 0']
    #allocation4 [shape = 's32[2]{0}', space=sflag, size = 0x8, scoped, tag = 'scoped memory for tpu_custom_call.1']
    %9 = vsyncpa [#allocation4], 0
    %s10 = scalar_lea.sflag [#allocation4], 1
    %11 = vsyncpa %s10, 0
    loop: start=0, step=1, limit=4
    $region2: #{tpu_custom_call.1} parent=1 // loop_pre_header
      _
    $region3: #{tpu_custom_call.1} parent=1 // loop_header
      %s13 = sphi 0, %s17
      %p14 = scmp.ge.s32.totalorder %s13, 4
      %s23 = sphi 0, %s25
      %s26 = sphi 0, %s23
      %s27 = sphi 0, %s26
      %s43 = sphi 0, %s27
      %s47 = sphi 0, %s47
      %s49 = sphi 0, %s47
      %s50 = sphi 0, %s49
      %s64 = sphi 0, %s50
      %s68 = sphi 0, %s68
      %s70 = sphi 0, %s68
      %s71 = sphi 0, %s70
      %s85 = sphi 0, %s71
      %s91 = sphi 0, %s93
      %s94 = sphi 0, %s91
      %s95 = sphi 0, %s94
      %s111 = sphi 0, %s95
    $region4: #{tpu_custom_call.1} parent=1 // loop_header_branch
      %16 = sbr.rel (%p14) target = $region8
    $region5: #{tpu_custom_call.1} parent=1 // loop_body
      %s18 = ssub.s32 %s13, 1
      %s19 = ssub.s32 %s13, 2
      %s20 = sadd.s32 %s13, 1
      %s21 = ssub.s32 %s13, %s20
      %p22 = scmp.eq.s32.totalorder %s21, 0
      %s24 = sadd.s32 %s23, 1
      %s25 = scalar_select %p22, %s23, %s24
      %p28 = pneg %p22
      %p29 = scmp.eq.s32.totalorder %s13, 1
      %p30 = por %p28, %p29
      %p31 = scmp.ne.s32.totalorder %s23, %s26
      %p32 = scmp.eq.s32.totalorder %s13, 0
      %p33 = por %p31, %p32
      %p34 = scmp.ne.s32.totalorder %s23, %s26
      %p35 = scmp.eq.s32.totalorder %s18, 1
      %p36 = por %p34, %p35
      %p37 = scmp.ne.s32.totalorder %s26, %s27
      %p38 = scmp.eq.s32.totalorder %s18, 0
      %p39 = por %p37, %p38
      %p40 = scmp.ne.s32.totalorder %s26, %s27
      %p41 = scmp.eq.s32.totalorder %s19, 1
      %p42 = por %p40, %p41
      %p44 = scmp.ne.s32.totalorder %s27, %s43
      %p45 = scmp.eq.s32.totalorder %s19, 0
      %p46 = por %p44, %p45
      %s48 = sadd.s32 %s47, 1
      %p51 = scmp.eq.s32.totalorder %s13, 1
      %p52 = scmp.ne.s32.totalorder %s47, %s49
      %p53 = scmp.eq.s32.totalorder %s13, 0
      %p54 = por %p52, %p53
      %p55 = scmp.ne.s32.totalorder %s47, %s49
      %p56 = scmp.eq.s32.totalorder %s18, 1
      %p57 = por %p55, %p56
      %p58 = scmp.ne.s32.totalorder %s49, %s50
      %p59 = scmp.eq.s32.totalorder %s18, 0
      %p60 = por %p58, %p59
      %p61 = scmp.ne.s32.totalorder %s49, %s50
      %p62 = scmp.eq.s32.totalorder %s19, 1
      %p63 = por %p61, %p62
      %p65 = scmp.ne.s32.totalorder %s50, %s64
      %p66 = scmp.eq.s32.totalorder %s19, 0
      %p67 = por %p65, %p66
      %s69 = sadd.s32 %s68, 1
      %p72 = scmp.eq.s32.totalorder %s13, 1
      %p73 = scmp.ne.s32.totalorder %s68, %s70
      %p74 = scmp.eq.s32.totalorder %s13, 0
      %p75 = por %p73, %p74
      %p76 = scmp.ne.s32.totalorder %s68, %s70
      %p77 = scmp.eq.s32.totalorder %s18, 1
      %p78 = por %p76, %p77
      %p79 = scmp.ne.s32.totalorder %s70, %s71
      %p80 = scmp.eq.s32.totalorder %s18, 0
      %p81 = por %p79, %p80
      %p82 = scmp.ne.s32.totalorder %s70, %s71
      %p83 = scmp.eq.s32.totalorder %s19, 1
      %p84 = por %p82, %p83
      %p86 = scmp.ne.s32.totalorder %s71, %s85
      %p87 = scmp.eq.s32.totalorder %s19, 0
      %p88 = por %p86, %p87
      %s89 = ssub.s32 %s13, %s20
      %p90 = scmp.eq.s32.totalorder %s89, 0
      %s92 = sadd.s32 %s91, 1
      %s93 = scalar_select %p90, %s91, %s92
      %p96 = pneg %p90
      %p97 = scmp.eq.s32.totalorder %s13, 1
      %p98 = por %p96, %p97
      %p99 = scmp.ne.s32.totalorder %s91, %s94
      %p100 = scmp.eq.s32.totalorder %s13, 0
      %p101 = por %p99, %p100
      %p102 = scmp.ne.s32.totalorder %s91, %s94
      %p103 = scmp.eq.s32.totalorder %s18, 1
      %p104 = por %p102, %p103
      %p105 = scmp.ne.s32.totalorder %s94, %s95
      %p106 = scmp.eq.s32.totalorder %s18, 0
      %p107 = por %p105, %p106
      %p108 = scmp.ne.s32.totalorder %s94, %s95
      %p109 = scmp.eq.s32.totalorder %s19, 1
      %p110 = por %p108, %p109
      %p112 = scmp.ne.s32.totalorder %s95, %s111
      %p113 = scmp.eq.s32.totalorder %s19, 0
      %p114 = por %p112, %p113
      %p115 = scmp.le.s32.totalorder 1, %s13
      %p116 = scmp.lt.s32.totalorder %s13, 3
      %p117 = pnand %p115, %p116
      %p118 = pneg %p117
      // Predicated region
      $region9: #{tpu_custom_call.1} parent=5 // pred_check
        _
      $region10: #{tpu_custom_call.1} parent=5 // pred_check_branch
        %120 = sbr.rel (%p117) target = $region12
      $region11: #{tpu_custom_call.1} parent=5 // pred_region
        %s121 = ssub.s32 %s13, 1
        // Predicated region
        $region13: #{tpu_custom_call.1} parent=11 // pred_check
          %p122 = pneg %p60
        $region14: #{tpu_custom_call.1} parent=11 // pred_check_branch
          %124 = sbr.rel (%p122) target = $region16
        $region15: #{tpu_custom_call.1} parent=11 // pred_region
          _
        $region16: #{tpu_custom_call.1} parent=11 // pred_fallthru
          _
        // Predicated region
        $region17: #{tpu_custom_call.1} parent=11 // pred_check
          %p125 = pneg %p81
        $region18: #{tpu_custom_call.1} parent=11 // pred_check_branch
          %127 = sbr.rel (%p125) target = $region20
        $region19: #{tpu_custom_call.1} parent=11 // pred_region
          _
        $region20: #{tpu_custom_call.1} parent=11 // pred_fallthru
          _
      $region12: #{tpu_custom_call.1} parent=5 // pred_fallthru
        _
      %p128 = scmp.lt.s32.totalorder %s13, 2
      // Predicated region
      $region21: #{tpu_custom_call.1} parent=5 // pred_check
        %p129 = pneg %p128
      $region22: #{tpu_custom_call.1} parent=5 // pred_check_branch
        %131 = sbr.rel (%p129) target = $region24
      $region23: #{tpu_custom_call.1} parent=5 // pred_region
        // Predicated region
        $region25: #{tpu_custom_call.1} parent=23 // pred_check
          %p132 = pneg %p33
        $region26: #{tpu_custom_call.1} parent=23 // pred_check_branch
          %134 = sbr.rel (%p132) target = $region28
        $region27: #{tpu_custom_call.1} parent=23 // pred_region
          %s135 = smul.u32 256, %s13
          %s136 = ssub.s32 257, %s135
          %p137 = scmp.lt.s32.totalorder %s136, 256
          %s138 = scalar_select %p137, %s136, 256
          %s139 = smul.u32 128, %s138
          %p140 = scmp.lt.s32.totalorder %s135, 256
          %s141 = scalar_select %p140, %s135, 256
          %s142 = smul.addr %s141, 8
          %s143 = scalar_lea.vmem %s0, %s142
          %s144 = smul.u32 256, %s13
          %s145 = ssub.s32 257, %s144
          %p146 = scmp.lt.s32.totalorder %s145, 256
          %s147 = scalar_select %p146, %s145, 256
          %s148 = smul.u32 128, %s147
        $region28: #{tpu_custom_call.1} parent=23 // pred_fallthru
          _
      $region24: #{tpu_custom_call.1} parent=5 // pred_fallthru
        _
      %p149 = scmp.le.s32.totalorder 1, %s13
      %p150 = scmp.lt.s32.totalorder %s13, 3
      %p151 = pnand %p149, %p150
      %p152 = pneg %p151
      // Predicated region
      $region29: #{tpu_custom_call.1} parent=5 // pred_check
        _
      $region30: #{tpu_custom_call.1} parent=5 // pred_check_branch
        %154 = sbr.rel (%p151) target = $region32
      $region31: #{tpu_custom_call.1} parent=5 // pred_region
        %s155 = ssub.s32 %s13, 1
        %s156 = smul.u32 256, %s18
        %s157 = ssub.s32 257, %s156
        %p158 = scmp.lt.s32.totalorder %s157, 256
        %s159 = scalar_select %p158, %s157, 256
        %s160 = smul.u32 128, %s159
        %p161 = scmp.lt.s32.totalorder %s156, 256
        %s162 = scalar_select %p161, %s156, 256
        %s163 = smul.addr %s162, 8
        %s164 = scalar_lea.vmem %s0, %s163
        %p165 = pneg %p39
        %p166 = pneg %p36
        %p167 = pneg %p60
        %p168 = pneg %p57
        %p169 = pneg %p81
        %p170 = pneg %p78
        %p171 = pneg %p107
        %p172 = pneg %p104
        %s173 = sand.u32 %s94, 1
        %s174 = scalar_lea.sflag [#allocation4], %s173
        %s175 = sand.u32 %s94, 1
        %s176 = smul.addr %s175, 16
        %s177 = scalar_lea.vmem [#allocation3], %s176
        %s178 = smul.u32 256, %s18
        %s179 = ssub.s32 257, %s178
        %p180 = scmp.lt.s32.totalorder %s179, 256
        %s181 = scalar_select %p180, %s179, 256
        %s182 = smul.u32 128, %s181
        %p183 = scmp.lt.s32.totalorder %s178, 256
        %s184 = scalar_select %p183, %s178, 256
        %s185 = smul.addr %s184, 8
        %s186 = scalar_lea.vmem %s0, %s185
        %s187 = smul.u32 256, %s18
        %s188 = ssub.s32 257, %s187
        %p189 = scmp.lt.s32.totalorder %s188, 256
        %s190 = scalar_select %p189, %s188, 256
        %s191 = smul.u32 128, %s190
        %v192 = vld [vmem:[%s186] sm:$0xff]
        %v193 = vld [vmem:[%s186 + $0x8] sm:$0xff]
        %v194 = vld [vmem:[%s186 + $0x10] sm:$0xff]
        %v195 = vld [vmem:[%s186 + $0x18] sm:$0xff]
        %v196 = vld [vmem:[%s186 + $0x20] sm:$0xff]
        %v197 = vld [vmem:[%s186 + $0x28] sm:$0xff]
        %v198 = vld [vmem:[%s186 + $0x30] sm:$0xff]
        %v199 = vld [vmem:[%s186 + $0x38] sm:$0xff]
        %v200 = vld [vmem:[%s186 + $0x40] sm:$0xff]
        %v201 = vld [vmem:[%s186 + $0x48] sm:$0xff]
        %v202 = vld [vmem:[%s186 + $0x50] sm:$0xff]
        %v203 = vld [vmem:[%s186 + $0x58] sm:$0xff]
        %v204 = vld [vmem:[%s186 + $0x60] sm:$0xff]
        %v205 = vld [vmem:[%s186 + $0x68] sm:$0xff]
        %v206 = vld [vmem:[%s186 + $0x70] sm:$0xff]
        %v207 = vld [vmem:[%s186 + $0x78] sm:$0xff]
        %v208 = vld [vmem:[%s186 + $0x80] sm:$0xff]
        %v209 = vld [vmem:[%s186 + $0x88] sm:$0xff]
        %v210 = vld [vmem:[%s186 + $0x90] sm:$0xff]
        %v211 = vld [vmem:[%s186 + $0x98] sm:$0xff]
        %v212 = vld [vmem:[%s186 + $0xa0] sm:$0xff]
        %v213 = vld [vmem:[%s186 + $0xa8] sm:$0xff]
        %v214 = vld [vmem:[%s186 + $0xb0] sm:$0xff]
        %v215 = vld [vmem:[%s186 + $0xb8] sm:$0xff]
        %v216 = vld [vmem:[%s186 + $0xc0] sm:$0xff]
        %v217 = vld [vmem:[%s186 + $0xc8] sm:$0xff]
        %v218 = vld [vmem:[%s186 + $0xd0] sm:$0xff]
        %v219 = vld [vmem:[%s186 + $0xd8] sm:$0xff]
        %v220 = vld [vmem:[%s186 + $0xe0] sm:$0xff]
        %v221 = vld [vmem:[%s186 + $0xe8] sm:$0xff]
        %v222 = vld [vmem:[%s186 + $0xf0] sm:$0xff]
        %v223 = vld [vmem:[%s186 + $0xf8] sm:$0xff]
        %v224 = vld [vmem:[%s186 + $0x100] sm:$0xff]
        %v225 = vld [vmem:[%s186 + $0x108] sm:$0xff]
        %v226 = vld [vmem:[%s186 + $0x110] sm:$0xff]
        %v227 = vld [vmem:[%s186 + $0x118] sm:$0xff]
        %v228 = vld [vmem:[%s186 + $0x120] sm:$0xff]
        %v229 = vld [vmem:[%s186 + $0x128] sm:$0xff]
        %v230 = vld [vmem:[%s186 + $0x130] sm:$0xff]
        %v231 = vld [vmem:[%s186 + $0x138] sm:$0xff]
        %v232 = vld [vmem:[%s186 + $0x140] sm:$0xff]
        %v233 = vld [vmem:[%s186 + $0x148] sm:$0xff]
        %v234 = vld [vmem:[%s186 + $0x150] sm:$0xff]
        %v235 = vld [vmem:[%s186 + $0x158] sm:$0xff]
        %v236 = vld [vmem:[%s186 + $0x160] sm:$0xff]
        %v237 = vld [vmem:[%s186 + $0x168] sm:$0xff]
        %v238 = vld [vmem:[%s186 + $0x170] sm:$0xff]
        %v239 = vld [vmem:[%s186 + $0x178] sm:$0xff]
        %v240 = vld [vmem:[%s186 + $0x180] sm:$0xff]
        %v241 = vld [vmem:[%s186 + $0x188] sm:$0xff]
        %v242 = vld [vmem:[%s186 + $0x190] sm:$0xff]
        %v243 = vld [vmem:[%s186 + $0x198] sm:$0xff]
        %v244 = vld [vmem:[%s186 + $0x1a0] sm:$0xff]
        %v245 = vld [vmem:[%s186 + $0x1a8] sm:$0xff]
        %v246 = vld [vmem:[%s186 + $0x1b0] sm:$0xff]
        %v247 = vld [vmem:[%s186 + $0x1b8] sm:$0xff]
        %v248 = vld [vmem:[%s186 + $0x1c0] sm:$0xff]
        %v249 = vld [vmem:[%s186 + $0x1c8] sm:$0xff]
        %v250 = vld [vmem:[%s186 + $0x1d0] sm:$0xff]
        %v251 = vld [vmem:[%s186 + $0x1d8] sm:$0xff]
        %v252 = vld [vmem:[%s186 + $0x1e0] sm:$0xff]
        %v253 = vld [vmem:[%s186 + $0x1e8] sm:$0xff]
        %v254 = vld [vmem:[%s186 + $0x1f0] sm:$0xff]
        %v255 = vld [vmem:[%s186 + $0x1f8] sm:$0xff]
        %v256 = vld [vmem:[%s186 + $0x200] sm:$0xff]
        %v257 = vld [vmem:[%s186 + $0x208] sm:$0xff]
        %v258 = vld [vmem:[%s186 + $0x210] sm:$0xff]
        %v259 = vld [vmem:[%s186 + $0x218] sm:$0xff]
        %v260 = vld [vmem:[%s186 + $0x220] sm:$0xff]
        %v261 = vld [vmem:[%s186 + $0x228] sm:$0xff]
        %v262 = vld [vmem:[%s186 + $0x230] sm:$0xff]
        %v263 = vld [vmem:[%s186 + $0x238] sm:$0xff]
        %v264 = vld [vmem:[%s186 + $0x240] sm:$0xff]
        %v265 = vld [vmem:[%s186 + $0x248] sm:$0xff]
        %v266 = vld [vmem:[%s186 + $0x250] sm:$0xff]
        %v267 = vld [vmem:[%s186 + $0x258] sm:$0xff]
        %v268 = vld [vmem:[%s186 + $0x260] sm:$0xff]
        %v269 = vld [vmem:[%s186 + $0x268] sm:$0xff]
        %v270 = vld [vmem:[%s186 + $0x270] sm:$0xff]
        %v271 = vld [vmem:[%s186 + $0x278] sm:$0xff]
        %v272 = vld [vmem:[%s186 + $0x280] sm:$0xff]
        %v273 = vld [vmem:[%s186 + $0x288] sm:$0xff]
        %v274 = vld [vmem:[%s186 + $0x290] sm:$0xff]
        %v275 = vld [vmem:[%s186 + $0x298] sm:$0xff]
        %v276 = vld [vmem:[%s186 + $0x2a0] sm:$0xff]
        %v277 = vld [vmem:[%s186 + $0x2a8] sm:$0xff]
        %v278 = vld [vmem:[%s186 + $0x2b0] sm:$0xff]
        %v279 = vld [vmem:[%s186 + $0x2b8] sm:$0xff]
        %v280 = vld [vmem:[%s186 + $0x2c0] sm:$0xff]
        %v281 = vld [vmem:[%s186 + $0x2c8] sm:$0xff]
        %v282 = vld [vmem:[%s186 + $0x2d0] sm:$0xff]
        %v283 = vld [vmem:[%s186 + $0x2d8] sm:$0xff]
        %v284 = vld [vmem:[%s186 + $0x2e0] sm:$0xff]
        %v285 = vld [vmem:[%s186 + $0x2e8] sm:$0xff]
        %v286 = vld [vmem:[%s186 + $0x2f0] sm:$0xff]
        %v287 = vld [vmem:[%s186 + $0x2f8] sm:$0xff]
        %v288 = vld [vmem:[%s186 + $0x300] sm:$0xff]
        %v289 = vld [vmem:[%s186 + $0x308] sm:$0xff]
        %v290 = vld [vmem:[%s186 + $0x310] sm:$0xff]
        %v291 = vld [vmem:[%s186 + $0x318] sm:$0xff]
        %v292 = vld [vmem:[%s186 + $0x320] sm:$0xff]
        %v293 = vld [vmem:[%s186 + $0x328] sm:$0xff]
        %v294 = vld [vmem:[%s186 + $0x330] sm:$0xff]
        %v295 = vld [vmem:[%s186 + $0x338] sm:$0xff]
        %v296 = vld [vmem:[%s186 + $0x340] sm:$0xff]
        %v297 = vld [vmem:[%s186 + $0x348] sm:$0xff]
        %v298 = vld [vmem:[%s186 + $0x350] sm:$0xff]
        %v299 = vld [vmem:[%s186 + $0x358] sm:$0xff]
        %v300 = vld [vmem:[%s186 + $0x360] sm:$0xff]
        %v301 = vld [vmem:[%s186 + $0x368] sm:$0xff]
        %v302 = vld [vmem:[%s186 + $0x370] sm:$0xff]
        %v303 = vld [vmem:[%s186 + $0x378] sm:$0xff]
        %v304 = vld [vmem:[%s186 + $0x380] sm:$0xff]
        %v305 = vld [vmem:[%s186 + $0x388] sm:$0xff]
        %v306 = vld [vmem:[%s186 + $0x390] sm:$0xff]
        %v307 = vld [vmem:[%s186 + $0x398] sm:$0xff]
        %v308 = vld [vmem:[%s186 + $0x3a0] sm:$0xff]
        %v309 = vld [vmem:[%s186 + $0x3a8] sm:$0xff]
        %v310 = vld [vmem:[%s186 + $0x3b0] sm:$0xff]
        %v311 = vld [vmem:[%s186 + $0x3b8] sm:$0xff]
        %v312 = vld [vmem:[%s186 + $0x3c0] sm:$0xff]
        %v313 = vld [vmem:[%s186 + $0x3c8] sm:$0xff]
        %v314 = vld [vmem:[%s186 + $0x3d0] sm:$0xff]
        %v315 = vld [vmem:[%s186 + $0x3d8] sm:$0xff]
        %v316 = vld [vmem:[%s186 + $0x3e0] sm:$0xff]
        %v317 = vld [vmem:[%s186 + $0x3e8] sm:$0xff]
        %v318 = vld [vmem:[%s186 + $0x3f0] sm:$0xff]
        %v319 = vld [vmem:[%s186 + $0x3f8] sm:$0xff]
        %v320 = vld [vmem:[%s186 + $0x400] sm:$0xff]
        %v321 = vld [vmem:[%s186 + $0x408] sm:$0xff]
        %v322 = vld [vmem:[%s186 + $0x410] sm:$0xff]
        %v323 = vld [vmem:[%s186 + $0x418] sm:$0xff]
        %v324 = vld [vmem:[%s186 + $0x420] sm:$0xff]
        %v325 = vld [vmem:[%s186 + $0x428] sm:$0xff]
        %v326 = vld [vmem:[%s186 + $0x430] sm:$0xff]
        %v327 = vld [vmem:[%s186 + $0x438] sm:$0xff]
        %v328 = vld [vmem:[%s186 + $0x440] sm:$0xff]
        %v329 = vld [vmem:[%s186 + $0x448] sm:$0xff]
        %v330 = vld [vmem:[%s186 + $0x450] sm:$0xff]
        %v331 = vld [vmem:[%s186 + $0x458] sm:$0xff]
        %v332 = vld [vmem:[%s186 + $0x460] sm:$0xff]
        %v333 = vld [vmem:[%s186 + $0x468] sm:$0xff]
        %v334 = vld [vmem:[%s186 + $0x470] sm:$0xff]
        %v335 = vld [vmem:[%s186 + $0x478] sm:$0xff]
        %v336 = vld [vmem:[%s186 + $0x480] sm:$0xff]
        %v337 = vld [vmem:[%s186 + $0x488] sm:$0xff]
        %v338 = vld [vmem:[%s186 + $0x490] sm:$0xff]
        %v339 = vld [vmem:[%s186 + $0x498] sm:$0xff]
        %v340 = vld [vmem:[%s186 + $0x4a0] sm:$0xff]
        %v341 = vld [vmem:[%s186 + $0x4a8] sm:$0xff]
        %v342 = vld [vmem:[%s186 + $0x4b0] sm:$0xff]
        %v343 = vld [vmem:[%s186 + $0x4b8] sm:$0xff]
        %v344 = vld [vmem:[%s186 + $0x4c0] sm:$0xff]
        %v345 = vld [vmem:[%s186 + $0x4c8] sm:$0xff]
        %v346 = vld [vmem:[%s186 + $0x4d0] sm:$0xff]
        %v347 = vld [vmem:[%s186 + $0x4d8] sm:$0xff]
        %v348 = vld [vmem:[%s186 + $0x4e0] sm:$0xff]
        %v349 = vld [vmem:[%s186 + $0x4e8] sm:$0xff]
        %v350 = vld [vmem:[%s186 + $0x4f0] sm:$0xff]
        %v351 = vld [vmem:[%s186 + $0x4f8] sm:$0xff]
        %v352 = vld [vmem:[%s186 + $0x500] sm:$0xff]
        %v353 = vld [vmem:[%s186 + $0x508] sm:$0xff]
        %v354 = vld [vmem:[%s186 + $0x510] sm:$0xff]
        %v355 = vld [vmem:[%s186 + $0x518] sm:$0xff]
        %v356 = vld [vmem:[%s186 + $0x520] sm:$0xff]
        %v357 = vld [vmem:[%s186 + $0x528] sm:$0xff]
        %v358 = vld [vmem:[%s186 + $0x530] sm:$0xff]
        %v359 = vld [vmem:[%s186 + $0x538] sm:$0xff]
        %v360 = vld [vmem:[%s186 + $0x540] sm:$0xff]
        %v361 = vld [vmem:[%s186 + $0x548] sm:$0xff]
        %v362 = vld [vmem:[%s186 + $0x550] sm:$0xff]
        %v363 = vld [vmem:[%s186 + $0x558] sm:$0xff]
        %v364 = vld [vmem:[%s186 + $0x560] sm:$0xff]
        %v365 = vld [vmem:[%s186 + $0x568] sm:$0xff]
        %v366 = vld [vmem:[%s186 + $0x570] sm:$0xff]
        %v367 = vld [vmem:[%s186 + $0x578] sm:$0xff]
        %v368 = vld [vmem:[%s186 + $0x580] sm:$0xff]
        %v369 = vld [vmem:[%s186 + $0x588] sm:$0xff]
        %v370 = vld [vmem:[%s186 + $0x590] sm:$0xff]
        %v371 = vld [vmem:[%s186 + $0x598] sm:$0xff]
        %v372 = vld [vmem:[%s186 + $0x5a0] sm:$0xff]
        %v373 = vld [vmem:[%s186 + $0x5a8] sm:$0xff]
        %v374 = vld [vmem:[%s186 + $0x5b0] sm:$0xff]
        %v375 = vld [vmem:[%s186 + $0x5b8] sm:$0xff]
        %v376 = vld [vmem:[%s186 + $0x5c0] sm:$0xff]
        %v377 = vld [vmem:[%s186 + $0x5c8] sm:$0xff]
        %v378 = vld [vmem:[%s186 + $0x5d0] sm:$0xff]
        %v379 = vld [vmem:[%s186 + $0x5d8] sm:$0xff]
        %v380 = vld [vmem:[%s186 + $0x5e0] sm:$0xff]
        %v381 = vld [vmem:[%s186 + $0x5e8] sm:$0xff]
        %v382 = vld [vmem:[%s186 + $0x5f0] sm:$0xff]
        %v383 = vld [vmem:[%s186 + $0x5f8] sm:$0xff]
        %v384 = vld [vmem:[%s186 + $0x600] sm:$0xff]
        %v385 = vld [vmem:[%s186 + $0x608] sm:$0xff]
        %v386 = vld [vmem:[%s186 + $0x610] sm:$0xff]
        %v387 = vld [vmem:[%s186 + $0x618] sm:$0xff]
        %v388 = vld [vmem:[%s186 + $0x620] sm:$0xff]
        %v389 = vld [vmem:[%s186 + $0x628] sm:$0xff]
        %v390 = vld [vmem:[%s186 + $0x630] sm:$0xff]
        %v391 = vld [vmem:[%s186 + $0x638] sm:$0xff]
        %v392 = vld [vmem:[%s186 + $0x640] sm:$0xff]
        %v393 = vld [vmem:[%s186 + $0x648] sm:$0xff]
        %v394 = vld [vmem:[%s186 + $0x650] sm:$0xff]
        %v395 = vld [vmem:[%s186 + $0x658] sm:$0xff]
        %v396 = vld [vmem:[%s186 + $0x660] sm:$0xff]
        %v397 = vld [vmem:[%s186 + $0x668] sm:$0xff]
        %v398 = vld [vmem:[%s186 + $0x670] sm:$0xff]
        %v399 = vld [vmem:[%s186 + $0x678] sm:$0xff]
        %v400 = vld [vmem:[%s186 + $0x680] sm:$0xff]
        %v401 = vld [vmem:[%s186 + $0x688] sm:$0xff]
        %v402 = vld [vmem:[%s186 + $0x690] sm:$0xff]
        %v403 = vld [vmem:[%s186 + $0x698] sm:$0xff]
        %v404 = vld [vmem:[%s186 + $0x6a0] sm:$0xff]
        %v405 = vld [vmem:[%s186 + $0x6a8] sm:$0xff]
        %v406 = vld [vmem:[%s186 + $0x6b0] sm:$0xff]
        %v407 = vld [vmem:[%s186 + $0x6b8] sm:$0xff]
        %v408 = vld [vmem:[%s186 + $0x6c0] sm:$0xff]
        %v409 = vld [vmem:[%s186 + $0x6c8] sm:$0xff]
        %v410 = vld [vmem:[%s186 + $0x6d0] sm:$0xff]
        %v411 = vld [vmem:[%s186 + $0x6d8] sm:$0xff]
        %v412 = vld [vmem:[%s186 + $0x6e0] sm:$0xff]
        %v413 = vld [vmem:[%s186 + $0x6e8] sm:$0xff]
        %v414 = vld [vmem:[%s186 + $0x6f0] sm:$0xff]
        %v415 = vld [vmem:[%s186 + $0x6f8] sm:$0xff]
        %v416 = vld [vmem:[%s186 + $0x700] sm:$0xff]
        %v417 = vld [vmem:[%s186 + $0x708] sm:$0xff]
        %v418 = vld [vmem:[%s186 + $0x710] sm:$0xff]
        %v419 = vld [vmem:[%s186 + $0x718] sm:$0xff]
        %v420 = vld [vmem:[%s186 + $0x720] sm:$0xff]
        %v421 = vld [vmem:[%s186 + $0x728] sm:$0xff]
        %v422 = vld [vmem:[%s186 + $0x730] sm:$0xff]
        %v423 = vld [vmem:[%s186 + $0x738] sm:$0xff]
        %v424 = vld [vmem:[%s186 + $0x740] sm:$0xff]
        %v425 = vld [vmem:[%s186 + $0x748] sm:$0xff]
        %v426 = vld [vmem:[%s186 + $0x750] sm:$0xff]
        %v427 = vld [vmem:[%s186 + $0x758] sm:$0xff]
        %v428 = vld [vmem:[%s186 + $0x760] sm:$0xff]
        %v429 = vld [vmem:[%s186 + $0x768] sm:$0xff]
        %v430 = vld [vmem:[%s186 + $0x770] sm:$0xff]
        %v431 = vld [vmem:[%s186 + $0x778] sm:$0xff]
        %v432 = vld [vmem:[%s186 + $0x780] sm:$0xff]
        %v433 = vld [vmem:[%s186 + $0x788] sm:$0xff]
        %v434 = vld [vmem:[%s186 + $0x790] sm:$0xff]
        %v435 = vld [vmem:[%s186 + $0x798] sm:$0xff]
        %v436 = vld [vmem:[%s186 + $0x7a0] sm:$0xff]
        %v437 = vld [vmem:[%s186 + $0x7a8] sm:$0xff]
        %v438 = vld [vmem:[%s186 + $0x7b0] sm:$0xff]
        %v439 = vld [vmem:[%s186 + $0x7b8] sm:$0xff]
        %v440 = vld [vmem:[%s186 + $0x7c0] sm:$0xff]
        %v441 = vld [vmem:[%s186 + $0x7c8] sm:$0xff]
        %v442 = vld [vmem:[%s186 + $0x7d0] sm:$0xff]
        %v443 = vld [vmem:[%s186 + $0x7d8] sm:$0xff]
        %v444 = vld [vmem:[%s186 + $0x7e0] sm:$0xff]
        %v445 = vld [vmem:[%s186 + $0x7e8] sm:$0xff]
        %v446 = vld [vmem:[%s186 + $0x7f0] sm:$0xff]
        %v447 = vld [vmem:[%s186 + $0x7f8] sm:$0xff]
        %v448 = vld [vmem:[%s1] sm:$0x1]
        %v450 = vlaneseq
        %v451 = vshrl.u32 %v450, 7
        %v452 = vsub.s32 0, %v451
        %v453 = vrot.slane %v448, %v452
        %v455 = vmul.f32 %v192, %v453
        %v456 = vmul.f32 %v193, %v453
        %v457 = vmul.f32 %v194, %v453
        %v458 = vmul.f32 %v195, %v453
        %v459 = vmul.f32 %v196, %v453
        %v460 = vmul.f32 %v197, %v453
        %v461 = vmul.f32 %v198, %v453
        %v462 = vmul.f32 %v199, %v453
        %v463 = vmul.f32 %v200, %v453
        %v464 = vmul.f32 %v201, %v453
        %v465 = vmul.f32 %v202, %v453
        %v466 = vmul.f32 %v203, %v453
        %v467 = vmul.f32 %v204, %v453
        %v468 = vmul.f32 %v205, %v453
        %v469 = vmul.f32 %v206, %v453
        %v470 = vmul.f32 %v207, %v453
        %v471 = vmul.f32 %v208, %v453
        %v472 = vmul.f32 %v209, %v453
        %v473 = vmul.f32 %v210, %v453
        %v474 = vmul.f32 %v211, %v453
        %v475 = vmul.f32 %v212, %v453
        %v476 = vmul.f32 %v213, %v453
        %v477 = vmul.f32 %v214, %v453
        %v478 = vmul.f32 %v215, %v453
        %v479 = vmul.f32 %v216, %v453
        %v480 = vmul.f32 %v217, %v453
        %v481 = vmul.f32 %v218, %v453
        %v482 = vmul.f32 %v219, %v453
        %v483 = vmul.f32 %v220, %v453
        %v484 = vmul.f32 %v221, %v453
        %v485 = vmul.f32 %v222, %v453
        %v486 = vmul.f32 %v223, %v453
        %v487 = vmul.f32 %v224, %v453
        %v488 = vmul.f32 %v225, %v453
        %v489 = vmul.f32 %v226, %v453
        %v490 = vmul.f32 %v227, %v453
        %v491 = vmul.f32 %v228, %v453
        %v492 = vmul.f32 %v229, %v453
        %v493 = vmul.f32 %v230, %v453
        %v494 = vmul.f32 %v231, %v453
        %v495 = vmul.f32 %v232, %v453
        %v496 = vmul.f32 %v233, %v453
        %v497 = vmul.f32 %v234, %v453
        %v498 = vmul.f32 %v235, %v453
        %v499 = vmul.f32 %v236, %v453
        %v500 = vmul.f32 %v237, %v453
        %v501 = vmul.f32 %v238, %v453
        %v502 = vmul.f32 %v239, %v453
        %v503 = vmul.f32 %v240, %v453
        %v504 = vmul.f32 %v241, %v453
        %v505 = vmul.f32 %v242, %v453
        %v506 = vmul.f32 %v243, %v453
        %v507 = vmul.f32 %v244, %v453
        %v508 = vmul.f32 %v245, %v453
        %v509 = vmul.f32 %v246, %v453
        %v510 = vmul.f32 %v247, %v453
        %v511 = vmul.f32 %v248, %v453
        %v512 = vmul.f32 %v249, %v453
        %v513 = vmul.f32 %v250, %v453
        %v514 = vmul.f32 %v251, %v453
        %v515 = vmul.f32 %v252, %v453
        %v516 = vmul.f32 %v253, %v453
        %v517 = vmul.f32 %v254, %v453
        %v518 = vmul.f32 %v255, %v453
        %v519 = vmul.f32 %v256, %v453
        %v520 = vmul.f32 %v257, %v453
        %v521 = vmul.f32 %v258, %v453
        %v522 = vmul.f32 %v259, %v453
        %v523 = vmul.f32 %v260, %v453
        %v524 = vmul.f32 %v261, %v453
        %v525 = vmul.f32 %v262, %v453
        %v526 = vmul.f32 %v263, %v453
        %v527 = vmul.f32 %v264, %v453
        %v528 = vmul.f32 %v265, %v453
        %v529 = vmul.f32 %v266, %v453
        %v530 = vmul.f32 %v267, %v453
        %v531 = vmul.f32 %v268, %v453
        %v532 = vmul.f32 %v269, %v453
        %v533 = vmul.f32 %v270, %v453
        %v534 = vmul.f32 %v271, %v453
        %v535 = vmul.f32 %v272, %v453
        %v536 = vmul.f32 %v273, %v453
        %v537 = vmul.f32 %v274, %v453
        %v538 = vmul.f32 %v275, %v453
        %v539 = vmul.f32 %v276, %v453
        %v540 = vmul.f32 %v277, %v453
        %v541 = vmul.f32 %v278, %v453
        %v542 = vmul.f32 %v279, %v453
        %v543 = vmul.f32 %v280, %v453
        %v544 = vmul.f32 %v281, %v453
        %v545 = vmul.f32 %v282, %v453
        %v546 = vmul.f32 %v283, %v453
        %v547 = vmul.f32 %v284, %v453
        %v548 = vmul.f32 %v285, %v453
        %v549 = vmul.f32 %v286, %v453
        %v550 = vmul.f32 %v287, %v453
        %v551 = vmul.f32 %v288, %v453
        %v552 = vmul.f32 %v289, %v453
        %v553 = vmul.f32 %v290, %v453
        %v554 = vmul.f32 %v291, %v453
        %v555 = vmul.f32 %v292, %v453
        %v556 = vmul.f32 %v293, %v453
        %v557 = vmul.f32 %v294, %v453
        %v558 = vmul.f32 %v295, %v453
        %v559 = vmul.f32 %v296, %v453
        %v560 = vmul.f32 %v297, %v453
        %v561 = vmul.f32 %v298, %v453
        %v562 = vmul.f32 %v299, %v453
        %v563 = vmul.f32 %v300, %v453
        %v564 = vmul.f32 %v301, %v453
        %v565 = vmul.f32 %v302, %v453
        %v566 = vmul.f32 %v303, %v453
        %v567 = vmul.f32 %v304, %v453
        %v568 = vmul.f32 %v305, %v453
        %v569 = vmul.f32 %v306, %v453
        %v570 = vmul.f32 %v307, %v453
        %v571 = vmul.f32 %v308, %v453
        %v572 = vmul.f32 %v309, %v453
        %v573 = vmul.f32 %v310, %v453
        %v574 = vmul.f32 %v311, %v453
        %v575 = vmul.f32 %v312, %v453
        %v576 = vmul.f32 %v313, %v453
        %v577 = vmul.f32 %v314, %v453
        %v578 = vmul.f32 %v315, %v453
        %v579 = vmul.f32 %v316, %v453
        %v580 = vmul.f32 %v317, %v453
        %v581 = vmul.f32 %v318, %v453
        %v582 = vmul.f32 %v319, %v453
        %v583 = vmul.f32 %v320, %v453
        %v584 = vmul.f32 %v321, %v453
        %v585 = vmul.f32 %v322, %v453
        %v586 = vmul.f32 %v323, %v453
        %v587 = vmul.f32 %v324, %v453
        %v588 = vmul.f32 %v325, %v453
        %v589 = vmul.f32 %v326, %v453
        %v590 = vmul.f32 %v327, %v453
        %v591 = vmul.f32 %v328, %v453
        %v592 = vmul.f32 %v329, %v453
        %v593 = vmul.f32 %v330, %v453
        %v594 = vmul.f32 %v331, %v453
        %v595 = vmul.f32 %v332, %v453
        %v596 = vmul.f32 %v333, %v453
        %v597 = vmul.f32 %v334, %v453
        %v598 = vmul.f32 %v335, %v453
        %v599 = vmul.f32 %v336, %v453
        %v600 = vmul.f32 %v337, %v453
        %v601 = vmul.f32 %v338, %v453
        %v602 = vmul.f32 %v339, %v453
        %v603 = vmul.f32 %v340, %v453
        %v604 = vmul.f32 %v341, %v453
        %v605 = vmul.f32 %v342, %v453
        %v606 = vmul.f32 %v343, %v453
        %v607 = vmul.f32 %v344, %v453
        %v608 = vmul.f32 %v345, %v453
        %v609 = vmul.f32 %v346, %v453
        %v610 = vmul.f32 %v347, %v453
        %v611 = vmul.f32 %v348, %v453
        %v612 = vmul.f32 %v349, %v453
        %v613 = vmul.f32 %v350, %v453
        %v614 = vmul.f32 %v351, %v453
        %v615 = vmul.f32 %v352, %v453
        %v616 = vmul.f32 %v353, %v453
        %v617 = vmul.f32 %v354, %v453
        %v618 = vmul.f32 %v355, %v453
        %v619 = vmul.f32 %v356, %v453
        %v620 = vmul.f32 %v357, %v453
        %v621 = vmul.f32 %v358, %v453
        %v622 = vmul.f32 %v359, %v453
        %v623 = vmul.f32 %v360, %v453
        %v624 = vmul.f32 %v361, %v453
        %v625 = vmul.f32 %v362, %v453
        %v626 = vmul.f32 %v363, %v453
        %v627 = vmul.f32 %v364, %v453
        %v628 = vmul.f32 %v365, %v453
        %v629 = vmul.f32 %v366, %v453
        %v630 = vmul.f32 %v367, %v453
        %v631 = vmul.f32 %v368, %v453
        %v632 = vmul.f32 %v369, %v453
        %v633 = vmul.f32 %v370, %v453
        %v634 = vmul.f32 %v371, %v453
        %v635 = vmul.f32 %v372, %v453
        %v636 = vmul.f32 %v373, %v453
        %v637 = vmul.f32 %v374, %v453
        %v638 = vmul.f32 %v375, %v453
        %v639 = vmul.f32 %v376, %v453
        %v640 = vmul.f32 %v377, %v453
        %v641 = vmul.f32 %v378, %v453
        %v642 = vmul.f32 %v379, %v453
        %v643 = vmul.f32 %v380, %v453
        %v644 = vmul.f32 %v381, %v453
        %v645 = vmul.f32 %v382, %v453
        %v646 = vmul.f32 %v383, %v453
        %v647 = vmul.f32 %v384, %v453
        %v648 = vmul.f32 %v385, %v453
        %v649 = vmul.f32 %v386, %v453
        %v650 = vmul.f32 %v387, %v453
        %v651 = vmul.f32 %v388, %v453
        %v652 = vmul.f32 %v389, %v453
        %v653 = vmul.f32 %v390, %v453
        %v654 = vmul.f32 %v391, %v453
        %v655 = vmul.f32 %v392, %v453
        %v656 = vmul.f32 %v393, %v453
        %v657 = vmul.f32 %v394, %v453
        %v658 = vmul.f32 %v395, %v453
        %v659 = vmul.f32 %v396, %v453
        %v660 = vmul.f32 %v397, %v453
        %v661 = vmul.f32 %v398, %v453
        %v662 = vmul.f32 %v399, %v453
        %v663 = vmul.f32 %v400, %v453
        %v664 = vmul.f32 %v401, %v453
        %v665 = vmul.f32 %v402, %v453
        %v666 = vmul.f32 %v403, %v453
        %v667 = vmul.f32 %v404, %v453
        %v668 = vmul.f32 %v405, %v453
        %v669 = vmul.f32 %v406, %v453
        %v670 = vmul.f32 %v407, %v453
        %v671 = vmul.f32 %v408, %v453
        %v672 = vmul.f32 %v409, %v453
        %v673 = vmul.f32 %v410, %v453
        %v674 = vmul.f32 %v411, %v453
        %v675 = vmul.f32 %v412, %v453
        %v676 = vmul.f32 %v413, %v453
        %v677 = vmul.f32 %v414, %v453
        %v678 = vmul.f32 %v415, %v453
        %v679 = vmul.f32 %v416, %v453
        %v680 = vmul.f32 %v417, %v453
        %v681 = vmul.f32 %v418, %v453
        %v682 = vmul.f32 %v419, %v453
        %v683 = vmul.f32 %v420, %v453
        %v684 = vmul.f32 %v421, %v453
        %v685 = vmul.f32 %v422, %v453
        %v686 = vmul.f32 %v423, %v453
        %v687 = vmul.f32 %v424, %v453
        %v688 = vmul.f32 %v425, %v453
        %v689 = vmul.f32 %v426, %v453
        %v690 = vmul.f32 %v427, %v453
        %v691 = vmul.f32 %v428, %v453
        %v692 = vmul.f32 %v429, %v453
        %v693 = vmul.f32 %v430, %v453
        %v694 = vmul.f32 %v431, %v453
        %v695 = vmul.f32 %v432, %v453
        %v696 = vmul.f32 %v433, %v453
        %v697 = vmul.f32 %v434, %v453
        %v698 = vmul.f32 %v435, %v453
        %v699 = vmul.f32 %v436, %v453
        %v700 = vmul.f32 %v437, %v453
        %v701 = vmul.f32 %v438, %v453
        %v702 = vmul.f32 %v439, %v453
        %v703 = vmul.f32 %v440, %v453
        %v704 = vmul.f32 %v441, %v453
        %v705 = vmul.f32 %v442, %v453
        %v706 = vmul.f32 %v443, %v453
        %v707 = vmul.f32 %v444, %v453
        %v708 = vmul.f32 %v445, %v453
        %v709 = vmul.f32 %v446, %v453
        %v710 = vmul.f32 %v447, %v453
        %vm711 = vcmask 261120
        %v712 = vsel %vm711, %v455, 0.0
        %713 = vadd.xlane.f32.xlu0 %v712
        %v714 = vpop.xlane.xlu0 %713
        %v715 = vsel %vm711, %v456, 0.0
        %716 = vadd.xlane.f32.xlu0 %v715
        %v717 = vpop.xlane.xlu0 %716
        %v718 = vsel %vm711, %v457, 0.0
        %719 = vadd.xlane.f32.xlu0 %v718
        %v720 = vpop.xlane.xlu0 %719
        %v721 = vsel %vm711, %v458, 0.0
        %722 = vadd.xlane.f32.xlu0 %v721
        %v723 = vpop.xlane.xlu0 %722
        %v724 = vsel %vm711, %v459, 0.0
        %725 = vadd.xlane.f32.xlu0 %v724
        %v726 = vpop.xlane.xlu0 %725
        %v727 = vsel %vm711, %v460, 0.0
        %728 = vadd.xlane.f32.xlu0 %v727
        %v729 = vpop.xlane.xlu0 %728
        %v730 = vsel %vm711, %v461, 0.0
        %731 = vadd.xlane.f32.xlu0 %v730
        %v732 = vpop.xlane.xlu0 %731
        %v733 = vsel %vm711, %v462, 0.0
        %734 = vadd.xlane.f32.xlu0 %v733
        %v735 = vpop.xlane.xlu0 %734
        %v736 = vsel %vm711, %v463, 0.0
        %737 = vadd.xlane.f32.xlu0 %v736
        %v738 = vpop.xlane.xlu0 %737
        %v739 = vsel %vm711, %v464, 0.0
        %740 = vadd.xlane.f32.xlu0 %v739
        %v741 = vpop.xlane.xlu0 %740
        %v742 = vsel %vm711, %v465, 0.0
        %743 = vadd.xlane.f32.xlu0 %v742
        %v744 = vpop.xlane.xlu0 %743
        %v745 = vsel %vm711, %v466, 0.0
        %746 = vadd.xlane.f32.xlu0 %v745
        %v747 = vpop.xlane.xlu0 %746
        %v748 = vsel %vm711, %v467, 0.0
        %749 = vadd.xlane.f32.xlu0 %v748
        %v750 = vpop.xlane.xlu0 %749
        %v751 = vsel %vm711, %v468, 0.0
        %752 = vadd.xlane.f32.xlu0 %v751
        %v753 = vpop.xlane.xlu0 %752
        %v754 = vsel %vm711, %v469, 0.0
        %755 = vadd.xlane.f32.xlu0 %v754
        %v756 = vpop.xlane.xlu0 %755
        %v757 = vsel %vm711, %v470, 0.0
        %758 = vadd.xlane.f32.xlu0 %v757
        %v759 = vpop.xlane.xlu0 %758
        %v760 = vsel %vm711, %v471, 0.0
        %761 = vadd.xlane.f32.xlu0 %v760
        %v762 = vpop.xlane.xlu0 %761
        %v763 = vsel %vm711, %v472, 0.0
        %764 = vadd.xlane.f32.xlu0 %v763
        %v765 = vpop.xlane.xlu0 %764
        %v766 = vsel %vm711, %v473, 0.0
        %767 = vadd.xlane.f32.xlu0 %v766
        %v768 = vpop.xlane.xlu0 %767
        %v769 = vsel %vm711, %v474, 0.0
        %770 = vadd.xlane.f32.xlu0 %v769
        %v771 = vpop.xlane.xlu0 %770
        %v772 = vsel %vm711, %v475, 0.0
        %773 = vadd.xlane.f32.xlu0 %v772
        %v774 = vpop.xlane.xlu0 %773
        %v775 = vsel %vm711, %v476, 0.0
        %776 = vadd.xlane.f32.xlu0 %v775
        %v777 = vpop.xlane.xlu0 %776
        %v778 = vsel %vm711, %v477, 0.0
        %779 = vadd.xlane.f32.xlu0 %v778
        %v780 = vpop.xlane.xlu0 %779
        %v781 = vsel %vm711, %v478, 0.0
        %782 = vadd.xlane.f32.xlu0 %v781
        %v783 = vpop.xlane.xlu0 %782
        %v784 = vsel %vm711, %v479, 0.0
        %785 = vadd.xlane.f32.xlu0 %v784
        %v786 = vpop.xlane.xlu0 %785
        %v787 = vsel %vm711, %v480, 0.0
        %788 = vadd.xlane.f32.xlu0 %v787
        %v789 = vpop.xlane.xlu0 %788
        %v790 = vsel %vm711, %v481, 0.0
        %791 = vadd.xlane.f32.xlu0 %v790
        %v792 = vpop.xlane.xlu0 %791
        %v793 = vsel %vm711, %v482, 0.0
        %794 = vadd.xlane.f32.xlu0 %v793
        %v795 = vpop.xlane.xlu0 %794
        %v796 = vsel %vm711, %v483, 0.0
        %797 = vadd.xlane.f32.xlu0 %v796
        %v798 = vpop.xlane.xlu0 %797
        %v799 = vsel %vm711, %v484, 0.0
        %800 = vadd.xlane.f32.xlu0 %v799
        %v801 = vpop.xlane.xlu0 %800
        %v802 = vsel %vm711, %v485, 0.0
        %803 = vadd.xlane.f32.xlu0 %v802
        %v804 = vpop.xlane.xlu0 %803
        %v805 = vsel %vm711, %v486, 0.0
        %806 = vadd.xlane.f32.xlu0 %v805
        %v807 = vpop.xlane.xlu0 %806
        %v808 = vsel %vm711, %v487, 0.0
        %809 = vadd.xlane.f32.xlu0 %v808
        %v810 = vpop.xlane.xlu0 %809
        %v811 = vsel %vm711, %v488, 0.0
        %812 = vadd.xlane.f32.xlu0 %v811
        %v813 = vpop.xlane.xlu0 %812
        %v814 = vsel %vm711, %v489, 0.0
        %815 = vadd.xlane.f32.xlu0 %v814
        %v816 = vpop.xlane.xlu0 %815
        %v817 = vsel %vm711, %v490, 0.0
        %818 = vadd.xlane.f32.xlu0 %v817
        %v819 = vpop.xlane.xlu0 %818
        %v820 = vsel %vm711, %v491, 0.0
        %821 = vadd.xlane.f32.xlu0 %v820
        %v822 = vpop.xlane.xlu0 %821
        %v823 = vsel %vm711, %v492, 0.0
        %824 = vadd.xlane.f32.xlu0 %v823
        %v825 = vpop.xlane.xlu0 %824
        %v826 = vsel %vm711, %v493, 0.0
        %827 = vadd.xlane.f32.xlu0 %v826
        %v828 = vpop.xlane.xlu0 %827
        %v829 = vsel %vm711, %v494, 0.0
        %830 = vadd.xlane.f32.xlu0 %v829
        %v831 = vpop.xlane.xlu0 %830
        %v832 = vsel %vm711, %v495, 0.0
        %833 = vadd.xlane.f32.xlu0 %v832
        %v834 = vpop.xlane.xlu0 %833
        %v835 = vsel %vm711, %v496, 0.0
        %836 = vadd.xlane.f32.xlu0 %v835
        %v837 = vpop.xlane.xlu0 %836
        %v838 = vsel %vm711, %v497, 0.0
        %839 = vadd.xlane.f32.xlu0 %v838
        %v840 = vpop.xlane.xlu0 %839
        %v841 = vsel %vm711, %v498, 0.0
        %842 = vadd.xlane.f32.xlu0 %v841
        %v843 = vpop.xlane.xlu0 %842
        %v844 = vsel %vm711, %v499, 0.0
        %845 = vadd.xlane.f32.xlu0 %v844
        %v846 = vpop.xlane.xlu0 %845
        %v847 = vsel %vm711, %v500, 0.0
        %848 = vadd.xlane.f32.xlu0 %v847
        %v849 = vpop.xlane.xlu0 %848
        %v850 = vsel %vm711, %v501, 0.0
        %851 = vadd.xlane.f32.xlu0 %v850
        %v852 = vpop.xlane.xlu0 %851
        %v853 = vsel %vm711, %v502, 0.0
        %854 = vadd.xlane.f32.xlu0 %v853
        %v855 = vpop.xlane.xlu0 %854
        %v856 = vsel %vm711, %v503, 0.0
        %857 = vadd.xlane.f32.xlu0 %v856
        %v858 = vpop.xlane.xlu0 %857
        %v859 = vsel %vm711, %v504, 0.0
        %860 = vadd.xlane.f32.xlu0 %v859
        %v861 = vpop.xlane.xlu0 %860
        %v862 = vsel %vm711, %v505, 0.0
        %863 = vadd.xlane.f32.xlu0 %v862
        %v864 = vpop.xlane.xlu0 %863
        %v865 = vsel %vm711, %v506, 0.0
        %866 = vadd.xlane.f32.xlu0 %v865
        %v867 = vpop.xlane.xlu0 %866
        %v868 = vsel %vm711, %v507, 0.0
        %869 = vadd.xlane.f32.xlu0 %v868
        %v870 = vpop.xlane.xlu0 %869
        %v871 = vsel %vm711, %v508, 0.0
        %872 = vadd.xlane.f32.xlu0 %v871
        %v873 = vpop.xlane.xlu0 %872
        %v874 = vsel %vm711, %v509, 0.0
        %875 = vadd.xlane.f32.xlu0 %v874
        %v876 = vpop.xlane.xlu0 %875
        %v877 = vsel %vm711, %v510, 0.0
        %878 = vadd.xlane.f32.xlu0 %v877
        %v879 = vpop.xlane.xlu0 %878
        %v880 = vsel %vm711, %v511, 0.0
        %881 = vadd.xlane.f32.xlu0 %v880
        %v882 = vpop.xlane.xlu0 %881
        %v883 = vsel %vm711, %v512, 0.0
        %884 = vadd.xlane.f32.xlu0 %v883
        %v885 = vpop.xlane.xlu0 %884
        %v886 = vsel %vm711, %v513, 0.0
        %887 = vadd.xlane.f32.xlu0 %v886
        %v888 = vpop.xlane.xlu0 %887
        %v889 = vsel %vm711, %v514, 0.0
        %890 = vadd.xlane.f32.xlu0 %v889
        %v891 = vpop.xlane.xlu0 %890
        %v892 = vsel %vm711, %v515, 0.0
        %893 = vadd.xlane.f32.xlu0 %v892
        %v894 = vpop.xlane.xlu0 %893
        %v895 = vsel %vm711, %v516, 0.0
        %896 = vadd.xlane.f32.xlu0 %v895
        %v897 = vpop.xlane.xlu0 %896
        %v898 = vsel %vm711, %v517, 0.0
        %899 = vadd.xlane.f32.xlu0 %v898
        %v900 = vpop.xlane.xlu0 %899
        %v901 = vsel %vm711, %v518, 0.0
        %902 = vadd.xlane.f32.xlu0 %v901
        %v903 = vpop.xlane.xlu0 %902
        %v904 = vsel %vm711, %v519, 0.0
        %905 = vadd.xlane.f32.xlu0 %v904
        %v906 = vpop.xlane.xlu0 %905
        %v907 = vsel %vm711, %v520, 0.0
        %908 = vadd.xlane.f32.xlu0 %v907
        %v909 = vpop.xlane.xlu0 %908
        %v910 = vsel %vm711, %v521, 0.0
        %911 = vadd.xlane.f32.xlu0 %v910
        %v912 = vpop.xlane.xlu0 %911
        %v913 = vsel %vm711, %v522, 0.0
        %914 = vadd.xlane.f32.xlu0 %v913
        %v915 = vpop.xlane.xlu0 %914
        %v916 = vsel %vm711, %v523, 0.0
        %917 = vadd.xlane.f32.xlu0 %v916
        %v918 = vpop.xlane.xlu0 %917
        %v919 = vsel %vm711, %v524, 0.0
        %920 = vadd.xlane.f32.xlu0 %v919
        %v921 = vpop.xlane.xlu0 %920
        %v922 = vsel %vm711, %v525, 0.0
        %923 = vadd.xlane.f32.xlu0 %v922
        %v924 = vpop.xlane.xlu0 %923
        %v925 = vsel %vm711, %v526, 0.0
        %926 = vadd.xlane.f32.xlu0 %v925
        %v927 = vpop.xlane.xlu0 %926
        %v928 = vsel %vm711, %v527, 0.0
        %929 = vadd.xlane.f32.xlu0 %v928
        %v930 = vpop.xlane.xlu0 %929
        %v931 = vsel %vm711, %v528, 0.0
        %932 = vadd.xlane.f32.xlu0 %v931
        %v933 = vpop.xlane.xlu0 %932
        %v934 = vsel %vm711, %v529, 0.0
        %935 = vadd.xlane.f32.xlu0 %v934
        %v936 = vpop.xlane.xlu0 %935
        %v937 = vsel %vm711, %v530, 0.0
        %938 = vadd.xlane.f32.xlu0 %v937
        %v939 = vpop.xlane.xlu0 %938
        %v940 = vsel %vm711, %v531, 0.0
        %941 = vadd.xlane.f32.xlu0 %v940
        %v942 = vpop.xlane.xlu0 %941
        %v943 = vsel %vm711, %v532, 0.0
        %944 = vadd.xlane.f32.xlu0 %v943
        %v945 = vpop.xlane.xlu0 %944
        %v946 = vsel %vm711, %v533, 0.0
        %947 = vadd.xlane.f32.xlu0 %v946
        %v948 = vpop.xlane.xlu0 %947
        %v949 = vsel %vm711, %v534, 0.0
        %950 = vadd.xlane.f32.xlu0 %v949
        %v951 = vpop.xlane.xlu0 %950
        %v952 = vsel %vm711, %v535, 0.0
        %953 = vadd.xlane.f32.xlu0 %v952
        %v954 = vpop.xlane.xlu0 %953
        %v955 = vsel %vm711, %v536, 0.0
        %956 = vadd.xlane.f32.xlu0 %v955
        %v957 = vpop.xlane.xlu0 %956
        %v958 = vsel %vm711, %v537, 0.0
        %959 = vadd.xlane.f32.xlu0 %v958
        %v960 = vpop.xlane.xlu0 %959
        %v961 = vsel %vm711, %v538, 0.0
        %962 = vadd.xlane.f32.xlu0 %v961
        %v963 = vpop.xlane.xlu0 %962
        %v964 = vsel %vm711, %v539, 0.0
        %965 = vadd.xlane.f32.xlu0 %v964
        %v966 = vpop.xlane.xlu0 %965
        %v967 = vsel %vm711, %v540, 0.0
        %968 = vadd.xlane.f32.xlu0 %v967
        %v969 = vpop.xlane.xlu0 %968
        %v970 = vsel %vm711, %v541, 0.0
        %971 = vadd.xlane.f32.xlu0 %v970
        %v972 = vpop.xlane.xlu0 %971
        %v973 = vsel %vm711, %v542, 0.0
        %974 = vadd.xlane.f32.xlu0 %v973
        %v975 = vpop.xlane.xlu0 %974
        %v976 = vsel %vm711, %v543, 0.0
        %977 = vadd.xlane.f32.xlu0 %v976
        %v978 = vpop.xlane.xlu0 %977
        %v979 = vsel %vm711, %v544, 0.0
        %980 = vadd.xlane.f32.xlu0 %v979
        %v981 = vpop.xlane.xlu0 %980
        %v982 = vsel %vm711, %v545, 0.0
        %983 = vadd.xlane.f32.xlu0 %v982
        %v984 = vpop.xlane.xlu0 %983
        %v985 = vsel %vm711, %v546, 0.0
        %986 = vadd.xlane.f32.xlu0 %v985
        %v987 = vpop.xlane.xlu0 %986
        %v988 = vsel %vm711, %v547, 0.0
        %989 = vadd.xlane.f32.xlu0 %v988
        %v990 = vpop.xlane.xlu0 %989
        %v991 = vsel %vm711, %v548, 0.0
        %992 = vadd.xlane.f32.xlu0 %v991
        %v993 = vpop.xlane.xlu0 %992
        %v994 = vsel %vm711, %v549, 0.0
        %995 = vadd.xlane.f32.xlu0 %v994
        %v996 = vpop.xlane.xlu0 %995
        %v997 = vsel %vm711, %v550, 0.0
        %998 = vadd.xlane.f32.xlu0 %v997
        %v999 = vpop.xlane.xlu0 %998
        %v1000 = vsel %vm711, %v551, 0.0
        %1001 = vadd.xlane.f32.xlu0 %v1000
        %v1002 = vpop.xlane.xlu0 %1001
        %v1003 = vsel %vm711, %v552, 0.0
        %1004 = vadd.xlane.f32.xlu0 %v1003
        %v1005 = vpop.xlane.xlu0 %1004
        %v1006 = vsel %vm711, %v553, 0.0
        %1007 = vadd.xlane.f32.xlu0 %v1006
        %v1008 = vpop.xlane.xlu0 %1007
        %v1009 = vsel %vm711, %v554, 0.0
        %1010 = vadd.xlane.f32.xlu0 %v1009
        %v1011 = vpop.xlane.xlu0 %1010
        %v1012 = vsel %vm711, %v555, 0.0
        %1013 = vadd.xlane.f32.xlu0 %v1012
        %v1014 = vpop.xlane.xlu0 %1013
        %v1015 = vsel %vm711, %v556, 0.0
        %1016 = vadd.xlane.f32.xlu0 %v1015
        %v1017 = vpop.xlane.xlu0 %1016
        %v1018 = vsel %vm711, %v557, 0.0
        %1019 = vadd.xlane.f32.xlu0 %v1018
        %v1020 = vpop.xlane.xlu0 %1019
        %v1021 = vsel %vm711, %v558, 0.0
        %1022 = vadd.xlane.f32.xlu0 %v1021
        %v1023 = vpop.xlane.xlu0 %1022
        %v1024 = vsel %vm711, %v559, 0.0
        %1025 = vadd.xlane.f32.xlu0 %v1024
        %v1026 = vpop.xlane.xlu0 %1025
        %v1027 = vsel %vm711, %v560, 0.0
        %1028 = vadd.xlane.f32.xlu0 %v1027
        %v1029 = vpop.xlane.xlu0 %1028
        %v1030 = vsel %vm711, %v561, 0.0
        %1031 = vadd.xlane.f32.xlu0 %v1030
        %v1032 = vpop.xlane.xlu0 %1031
        %v1033 = vsel %vm711, %v562, 0.0
        %1034 = vadd.xlane.f32.xlu0 %v1033
        %v1035 = vpop.xlane.xlu0 %1034
        %v1036 = vsel %vm711, %v563, 0.0
        %1037 = vadd.xlane.f32.xlu0 %v1036
        %v1038 = vpop.xlane.xlu0 %1037
        %v1039 = vsel %vm711, %v564, 0.0
        %1040 = vadd.xlane.f32.xlu0 %v1039
        %v1041 = vpop.xlane.xlu0 %1040
        %v1042 = vsel %vm711, %v565, 0.0
        %1043 = vadd.xlane.f32.xlu0 %v1042
        %v1044 = vpop.xlane.xlu0 %1043
        %v1045 = vsel %vm711, %v566, 0.0
        %1046 = vadd.xlane.f32.xlu0 %v1045
        %v1047 = vpop.xlane.xlu0 %1046
        %v1048 = vsel %vm711, %v567, 0.0
        %1049 = vadd.xlane.f32.xlu0 %v1048
        %v1050 = vpop.xlane.xlu0 %1049
        %v1051 = vsel %vm711, %v568, 0.0
        %1052 = vadd.xlane.f32.xlu0 %v1051
        %v1053 = vpop.xlane.xlu0 %1052
        %v1054 = vsel %vm711, %v569, 0.0
        %1055 = vadd.xlane.f32.xlu0 %v1054
        %v1056 = vpop.xlane.xlu0 %1055
        %v1057 = vsel %vm711, %v570, 0.0
        %1058 = vadd.xlane.f32.xlu0 %v1057
        %v1059 = vpop.xlane.xlu0 %1058
        %v1060 = vsel %vm711, %v571, 0.0
        %1061 = vadd.xlane.f32.xlu0 %v1060
        %v1062 = vpop.xlane.xlu0 %1061
        %v1063 = vsel %vm711, %v572, 0.0
        %1064 = vadd.xlane.f32.xlu0 %v1063
        %v1065 = vpop.xlane.xlu0 %1064
        %v1066 = vsel %vm711, %v573, 0.0
        %1067 = vadd.xlane.f32.xlu0 %v1066
        %v1068 = vpop.xlane.xlu0 %1067
        %v1069 = vsel %vm711, %v574, 0.0
        %1070 = vadd.xlane.f32.xlu0 %v1069
        %v1071 = vpop.xlane.xlu0 %1070
        %v1072 = vsel %vm711, %v575, 0.0
        %1073 = vadd.xlane.f32.xlu0 %v1072
        %v1074 = vpop.xlane.xlu0 %1073
        %v1075 = vsel %vm711, %v576, 0.0
        %1076 = vadd.xlane.f32.xlu0 %v1075
        %v1077 = vpop.xlane.xlu0 %1076
        %v1078 = vsel %vm711, %v577, 0.0
        %1079 = vadd.xlane.f32.xlu0 %v1078
        %v1080 = vpop.xlane.xlu0 %1079
        %v1081 = vsel %vm711, %v578, 0.0
        %1082 = vadd.xlane.f32.xlu0 %v1081
        %v1083 = vpop.xlane.xlu0 %1082
        %v1084 = vsel %vm711, %v579, 0.0
        %1085 = vadd.xlane.f32.xlu0 %v1084
        %v1086 = vpop.xlane.xlu0 %1085
        %v1087 = vsel %vm711, %v580, 0.0
        %1088 = vadd.xlane.f32.xlu0 %v1087
        %v1089 = vpop.xlane.xlu0 %1088
        %v1090 = vsel %vm711, %v581, 0.0
        %1091 = vadd.xlane.f32.xlu0 %v1090
        %v1092 = vpop.xlane.xlu0 %1091
        %v1093 = vsel %vm711, %v582, 0.0
        %1094 = vadd.xlane.f32.xlu0 %v1093
        %v1095 = vpop.xlane.xlu0 %1094
        %v1096 = vsel %vm711, %v583, 0.0
        %1097 = vadd.xlane.f32.xlu0 %v1096
        %v1098 = vpop.xlane.xlu0 %1097
        %v1099 = vsel %vm711, %v584, 0.0
        %1100 = vadd.xlane.f32.xlu0 %v1099
        %v1101 = vpop.xlane.xlu0 %1100
        %v1102 = vsel %vm711, %v585, 0.0
        %1103 = vadd.xlane.f32.xlu0 %v1102
        %v1104 = vpop.xlane.xlu0 %1103
        %v1105 = vsel %vm711, %v586, 0.0
        %1106 = vadd.xlane.f32.xlu0 %v1105
        %v1107 = vpop.xlane.xlu0 %1106
        %v1108 = vsel %vm711, %v587, 0.0
        %1109 = vadd.xlane.f32.xlu0 %v1108
        %v1110 = vpop.xlane.xlu0 %1109
        %v1111 = vsel %vm711, %v588, 0.0
        %1112 = vadd.xlane.f32.xlu0 %v1111
        %v1113 = vpop.xlane.xlu0 %1112
        %v1114 = vsel %vm711, %v589, 0.0
        %1115 = vadd.xlane.f32.xlu0 %v1114
        %v1116 = vpop.xlane.xlu0 %1115
        %v1117 = vsel %vm711, %v590, 0.0
        %1118 = vadd.xlane.f32.xlu0 %v1117
        %v1119 = vpop.xlane.xlu0 %1118
        %v1120 = vsel %vm711, %v591, 0.0
        %1121 = vadd.xlane.f32.xlu0 %v1120
        %v1122 = vpop.xlane.xlu0 %1121
        %v1123 = vsel %vm711, %v592, 0.0
        %1124 = vadd.xlane.f32.xlu0 %v1123
        %v1125 = vpop.xlane.xlu0 %1124
        %v1126 = vsel %vm711, %v593, 0.0
        %1127 = vadd.xlane.f32.xlu0 %v1126
        %v1128 = vpop.xlane.xlu0 %1127
        %v1129 = vsel %vm711, %v594, 0.0
        %1130 = vadd.xlane.f32.xlu0 %v1129
        %v1131 = vpop.xlane.xlu0 %1130
        %v1132 = vsel %vm711, %v595, 0.0
        %1133 = vadd.xlane.f32.xlu0 %v1132
        %v1134 = vpop.xlane.xlu0 %1133
        %v1135 = vsel %vm711, %v596, 0.0
        %1136 = vadd.xlane.f32.xlu0 %v1135
        %v1137 = vpop.xlane.xlu0 %1136
        %v1138 = vsel %vm711, %v597, 0.0
        %1139 = vadd.xlane.f32.xlu0 %v1138
        %v1140 = vpop.xlane.xlu0 %1139
        %v1141 = vsel %vm711, %v598, 0.0
        %1142 = vadd.xlane.f32.xlu0 %v1141
        %v1143 = vpop.xlane.xlu0 %1142
        %v1144 = vsel %vm711, %v599, 0.0
        %1145 = vadd.xlane.f32.xlu0 %v1144
        %v1146 = vpop.xlane.xlu0 %1145
        %v1147 = vsel %vm711, %v600, 0.0
        %1148 = vadd.xlane.f32.xlu0 %v1147
        %v1149 = vpop.xlane.xlu0 %1148
        %v1150 = vsel %vm711, %v601, 0.0
        %1151 = vadd.xlane.f32.xlu0 %v1150
        %v1152 = vpop.xlane.xlu0 %1151
        %v1153 = vsel %vm711, %v602, 0.0
        %1154 = vadd.xlane.f32.xlu0 %v1153
        %v1155 = vpop.xlane.xlu0 %1154
        %v1156 = vsel %vm711, %v603, 0.0
        %1157 = vadd.xlane.f32.xlu0 %v1156
        %v1158 = vpop.xlane.xlu0 %1157
        %v1159 = vsel %vm711, %v604, 0.0
        %1160 = vadd.xlane.f32.xlu0 %v1159
        %v1161 = vpop.xlane.xlu0 %1160
        %v1162 = vsel %vm711, %v605, 0.0
        %1163 = vadd.xlane.f32.xlu0 %v1162
        %v1164 = vpop.xlane.xlu0 %1163
        %v1165 = vsel %vm711, %v606, 0.0
        %1166 = vadd.xlane.f32.xlu0 %v1165
        %v1167 = vpop.xlane.xlu0 %1166
        %v1168 = vsel %vm711, %v607, 0.0
        %1169 = vadd.xlane.f32.xlu0 %v1168
        %v1170 = vpop.xlane.xlu0 %1169
        %v1171 = vsel %vm711, %v608, 0.0
        %1172 = vadd.xlane.f32.xlu0 %v1171
        %v1173 = vpop.xlane.xlu0 %1172
        %v1174 = vsel %vm711, %v609, 0.0
        %1175 = vadd.xlane.f32.xlu0 %v1174
        %v1176 = vpop.xlane.xlu0 %1175
        %v1177 = vsel %vm711, %v610, 0.0
        %1178 = vadd.xlane.f32.xlu0 %v1177
        %v1179 = vpop.xlane.xlu0 %1178
        %v1180 = vsel %vm711, %v611, 0.0
        %1181 = vadd.xlane.f32.xlu0 %v1180
        %v1182 = vpop.xlane.xlu0 %1181
        %v1183 = vsel %vm711, %v612, 0.0
        %1184 = vadd.xlane.f32.xlu0 %v1183
        %v1185 = vpop.xlane.xlu0 %1184
        %v1186 = vsel %vm711, %v613, 0.0
        %1187 = vadd.xlane.f32.xlu0 %v1186
        %v1188 = vpop.xlane.xlu0 %1187
        %v1189 = vsel %vm711, %v614, 0.0
        %1190 = vadd.xlane.f32.xlu0 %v1189
        %v1191 = vpop.xlane.xlu0 %1190
        %v1192 = vsel %vm711, %v615, 0.0
        %1193 = vadd.xlane.f32.xlu0 %v1192
        %v1194 = vpop.xlane.xlu0 %1193
        %v1195 = vsel %vm711, %v616, 0.0
        %1196 = vadd.xlane.f32.xlu0 %v1195
        %v1197 = vpop.xlane.xlu0 %1196
        %v1198 = vsel %vm711, %v617, 0.0
        %1199 = vadd.xlane.f32.xlu0 %v1198
        %v1200 = vpop.xlane.xlu0 %1199
        %v1201 = vsel %vm711, %v618, 0.0
        %1202 = vadd.xlane.f32.xlu0 %v1201
        %v1203 = vpop.xlane.xlu0 %1202
        %v1204 = vsel %vm711, %v619, 0.0
        %1205 = vadd.xlane.f32.xlu0 %v1204
        %v1206 = vpop.xlane.xlu0 %1205
        %v1207 = vsel %vm711, %v620, 0.0
        %1208 = vadd.xlane.f32.xlu0 %v1207
        %v1209 = vpop.xlane.xlu0 %1208
        %v1210 = vsel %vm711, %v621, 0.0
        %1211 = vadd.xlane.f32.xlu0 %v1210
        %v1212 = vpop.xlane.xlu0 %1211
        %v1213 = vsel %vm711, %v622, 0.0
        %1214 = vadd.xlane.f32.xlu0 %v1213
        %v1215 = vpop.xlane.xlu0 %1214
        %v1216 = vsel %vm711, %v623, 0.0
        %1217 = vadd.xlane.f32.xlu0 %v1216
        %v1218 = vpop.xlane.xlu0 %1217
        %v1219 = vsel %vm711, %v624, 0.0
        %1220 = vadd.xlane.f32.xlu0 %v1219
        %v1221 = vpop.xlane.xlu0 %1220
        %v1222 = vsel %vm711, %v625, 0.0
        %1223 = vadd.xlane.f32.xlu0 %v1222
        %v1224 = vpop.xlane.xlu0 %1223
        %v1225 = vsel %vm711, %v626, 0.0
        %1226 = vadd.xlane.f32.xlu0 %v1225
        %v1227 = vpop.xlane.xlu0 %1226
        %v1228 = vsel %vm711, %v627, 0.0
        %1229 = vadd.xlane.f32.xlu0 %v1228
        %v1230 = vpop.xlane.xlu0 %1229
        %v1231 = vsel %vm711, %v628, 0.0
        %1232 = vadd.xlane.f32.xlu0 %v1231
        %v1233 = vpop.xlane.xlu0 %1232
        %v1234 = vsel %vm711, %v629, 0.0
        %1235 = vadd.xlane.f32.xlu0 %v1234
        %v1236 = vpop.xlane.xlu0 %1235
        %v1237 = vsel %vm711, %v630, 0.0
        %1238 = vadd.xlane.f32.xlu0 %v1237
        %v1239 = vpop.xlane.xlu0 %1238
        %v1240 = vsel %vm711, %v631, 0.0
        %1241 = vadd.xlane.f32.xlu0 %v1240
        %v1242 = vpop.xlane.xlu0 %1241
        %v1243 = vsel %vm711, %v632, 0.0
        %1244 = vadd.xlane.f32.xlu0 %v1243
        %v1245 = vpop.xlane.xlu0 %1244
        %v1246 = vsel %vm711, %v633, 0.0
        %1247 = vadd.xlane.f32.xlu0 %v1246
        %v1248 = vpop.xlane.xlu0 %1247
        %v1249 = vsel %vm711, %v634, 0.0
        %1250 = vadd.xlane.f32.xlu0 %v1249
        %v1251 = vpop.xlane.xlu0 %1250
        %v1252 = vsel %vm711, %v635, 0.0
        %1253 = vadd.xlane.f32.xlu0 %v1252
        %v1254 = vpop.xlane.xlu0 %1253
        %v1255 = vsel %vm711, %v636, 0.0
        %1256 = vadd.xlane.f32.xlu0 %v1255
        %v1257 = vpop.xlane.xlu0 %1256
        %v1258 = vsel %vm711, %v637, 0.0
        %1259 = vadd.xlane.f32.xlu0 %v1258
        %v1260 = vpop.xlane.xlu0 %1259
        %v1261 = vsel %vm711, %v638, 0.0
        %1262 = vadd.xlane.f32.xlu0 %v1261
        %v1263 = vpop.xlane.xlu0 %1262
        %v1264 = vsel %vm711, %v639, 0.0
        %1265 = vadd.xlane.f32.xlu0 %v1264
        %v1266 = vpop.xlane.xlu0 %1265
        %v1267 = vsel %vm711, %v640, 0.0
        %1268 = vadd.xlane.f32.xlu0 %v1267
        %v1269 = vpop.xlane.xlu0 %1268
        %v1270 = vsel %vm711, %v641, 0.0
        %1271 = vadd.xlane.f32.xlu0 %v1270
        %v1272 = vpop.xlane.xlu0 %1271
        %v1273 = vsel %vm711, %v642, 0.0
        %1274 = vadd.xlane.f32.xlu0 %v1273
        %v1275 = vpop.xlane.xlu0 %1274
        %v1276 = vsel %vm711, %v643, 0.0
        %1277 = vadd.xlane.f32.xlu0 %v1276
        %v1278 = vpop.xlane.xlu0 %1277
        %v1279 = vsel %vm711, %v644, 0.0
        %1280 = vadd.xlane.f32.xlu0 %v1279
        %v1281 = vpop.xlane.xlu0 %1280
        %v1282 = vsel %vm711, %v645, 0.0
        %1283 = vadd.xlane.f32.xlu0 %v1282
        %v1284 = vpop.xlane.xlu0 %1283
        %v1285 = vsel %vm711, %v646, 0.0
        %1286 = vadd.xlane.f32.xlu0 %v1285
        %v1287 = vpop.xlane.xlu0 %1286
        %v1288 = vsel %vm711, %v647, 0.0
        %1289 = vadd.xlane.f32.xlu0 %v1288
        %v1290 = vpop.xlane.xlu0 %1289
        %v1291 = vsel %vm711, %v648, 0.0
        %1292 = vadd.xlane.f32.xlu0 %v1291
        %v1293 = vpop.xlane.xlu0 %1292
        %v1294 = vsel %vm711, %v649, 0.0
        %1295 = vadd.xlane.f32.xlu0 %v1294
        %v1296 = vpop.xlane.xlu0 %1295
        %v1297 = vsel %vm711, %v650, 0.0
        %1298 = vadd.xlane.f32.xlu0 %v1297
        %v1299 = vpop.xlane.xlu0 %1298
        %v1300 = vsel %vm711, %v651, 0.0
        %1301 = vadd.xlane.f32.xlu0 %v1300
        %v1302 = vpop.xlane.xlu0 %1301
        %v1303 = vsel %vm711, %v652, 0.0
        %1304 = vadd.xlane.f32.xlu0 %v1303
        %v1305 = vpop.xlane.xlu0 %1304
        %v1306 = vsel %vm711, %v653, 0.0
        %1307 = vadd.xlane.f32.xlu0 %v1306
        %v1308 = vpop.xlane.xlu0 %1307
        %v1309 = vsel %vm711, %v654, 0.0
        %1310 = vadd.xlane.f32.xlu0 %v1309
        %v1311 = vpop.xlane.xlu0 %1310
        %v1312 = vsel %vm711, %v655, 0.0
        %1313 = vadd.xlane.f32.xlu0 %v1312
        %v1314 = vpop.xlane.xlu0 %1313
        %v1315 = vsel %vm711, %v656, 0.0
        %1316 = vadd.xlane.f32.xlu0 %v1315
        %v1317 = vpop.xlane.xlu0 %1316
        %v1318 = vsel %vm711, %v657, 0.0
        %1319 = vadd.xlane.f32.xlu0 %v1318
        %v1320 = vpop.xlane.xlu0 %1319
        %v1321 = vsel %vm711, %v658, 0.0
        %1322 = vadd.xlane.f32.xlu0 %v1321
        %v1323 = vpop.xlane.xlu0 %1322
        %v1324 = vsel %vm711, %v659, 0.0
        %1325 = vadd.xlane.f32.xlu0 %v1324
        %v1326 = vpop.xlane.xlu0 %1325
        %v1327 = vsel %vm711, %v660, 0.0
        %1328 = vadd.xlane.f32.xlu0 %v1327
        %v1329 = vpop.xlane.xlu0 %1328
        %v1330 = vsel %vm711, %v661, 0.0
        %1331 = vadd.xlane.f32.xlu0 %v1330
        %v1332 = vpop.xlane.xlu0 %1331
        %v1333 = vsel %vm711, %v662, 0.0
        %1334 = vadd.xlane.f32.xlu0 %v1333
        %v1335 = vpop.xlane.xlu0 %1334
        %v1336 = vsel %vm711, %v663, 0.0
        %1337 = vadd.xlane.f32.xlu0 %v1336
        %v1338 = vpop.xlane.xlu0 %1337
        %v1339 = vsel %vm711, %v664, 0.0
        %1340 = vadd.xlane.f32.xlu0 %v1339
        %v1341 = vpop.xlane.xlu0 %1340
        %v1342 = vsel %vm711, %v665, 0.0
        %1343 = vadd.xlane.f32.xlu0 %v1342
        %v1344 = vpop.xlane.xlu0 %1343
        %v1345 = vsel %vm711, %v666, 0.0
        %1346 = vadd.xlane.f32.xlu0 %v1345
        %v1347 = vpop.xlane.xlu0 %1346
        %v1348 = vsel %vm711, %v667, 0.0
        %1349 = vadd.xlane.f32.xlu0 %v1348
        %v1350 = vpop.xlane.xlu0 %1349
        %v1351 = vsel %vm711, %v668, 0.0
        %1352 = vadd.xlane.f32.xlu0 %v1351
        %v1353 = vpop.xlane.xlu0 %1352
        %v1354 = vsel %vm711, %v669, 0.0
        %1355 = vadd.xlane.f32.xlu0 %v1354
        %v1356 = vpop.xlane.xlu0 %1355
        %v1357 = vsel %vm711, %v670, 0.0
        %1358 = vadd.xlane.f32.xlu0 %v1357
        %v1359 = vpop.xlane.xlu0 %1358
        %v1360 = vsel %vm711, %v671, 0.0
        %1361 = vadd.xlane.f32.xlu0 %v1360
        %v1362 = vpop.xlane.xlu0 %1361
        %v1363 = vsel %vm711, %v672, 0.0
        %1364 = vadd.xlane.f32.xlu0 %v1363
        %v1365 = vpop.xlane.xlu0 %1364
        %v1366 = vsel %vm711, %v673, 0.0
        %1367 = vadd.xlane.f32.xlu0 %v1366
        %v1368 = vpop.xlane.xlu0 %1367
        %v1369 = vsel %vm711, %v674, 0.0
        %1370 = vadd.xlane.f32.xlu0 %v1369
        %v1371 = vpop.xlane.xlu0 %1370
        %v1372 = vsel %vm711, %v675, 0.0
        %1373 = vadd.xlane.f32.xlu0 %v1372
        %v1374 = vpop.xlane.xlu0 %1373
        %v1375 = vsel %vm711, %v676, 0.0
        %1376 = vadd.xlane.f32.xlu0 %v1375
        %v1377 = vpop.xlane.xlu0 %1376
        %v1378 = vsel %vm711, %v677, 0.0
        %1379 = vadd.xlane.f32.xlu0 %v1378
        %v1380 = vpop.xlane.xlu0 %1379
        %v1381 = vsel %vm711, %v678, 0.0
        %1382 = vadd.xlane.f32.xlu0 %v1381
        %v1383 = vpop.xlane.xlu0 %1382
        %v1384 = vsel %vm711, %v679, 0.0
        %1385 = vadd.xlane.f32.xlu0 %v1384
        %v1386 = vpop.xlane.xlu0 %1385
        %v1387 = vsel %vm711, %v680, 0.0
        %1388 = vadd.xlane.f32.xlu0 %v1387
        %v1389 = vpop.xlane.xlu0 %1388
        %v1390 = vsel %vm711, %v681, 0.0
        %1391 = vadd.xlane.f32.xlu0 %v1390
        %v1392 = vpop.xlane.xlu0 %1391
        %v1393 = vsel %vm711, %v682, 0.0
        %1394 = vadd.xlane.f32.xlu0 %v1393
        %v1395 = vpop.xlane.xlu0 %1394
        %v1396 = vsel %vm711, %v683, 0.0
        %1397 = vadd.xlane.f32.xlu0 %v1396
        %v1398 = vpop.xlane.xlu0 %1397
        %v1399 = vsel %vm711, %v684, 0.0
        %1400 = vadd.xlane.f32.xlu0 %v1399
        %v1401 = vpop.xlane.xlu0 %1400
        %v1402 = vsel %vm711, %v685, 0.0
        %1403 = vadd.xlane.f32.xlu0 %v1402
        %v1404 = vpop.xlane.xlu0 %1403
        %v1405 = vsel %vm711, %v686, 0.0
        %1406 = vadd.xlane.f32.xlu0 %v1405
        %v1407 = vpop.xlane.xlu0 %1406
        %v1408 = vsel %vm711, %v687, 0.0
        %1409 = vadd.xlane.f32.xlu0 %v1408
        %v1410 = vpop.xlane.xlu0 %1409
        %v1411 = vsel %vm711, %v688, 0.0
        %1412 = vadd.xlane.f32.xlu0 %v1411
        %v1413 = vpop.xlane.xlu0 %1412
        %v1414 = vsel %vm711, %v689, 0.0
        %1415 = vadd.xlane.f32.xlu0 %v1414
        %v1416 = vpop.xlane.xlu0 %1415
        %v1417 = vsel %vm711, %v690, 0.0
        %1418 = vadd.xlane.f32.xlu0 %v1417
        %v1419 = vpop.xlane.xlu0 %1418
        %v1420 = vsel %vm711, %v691, 0.0
        %1421 = vadd.xlane.f32.xlu0 %v1420
        %v1422 = vpop.xlane.xlu0 %1421
        %v1423 = vsel %vm711, %v692, 0.0
        %1424 = vadd.xlane.f32.xlu0 %v1423
        %v1425 = vpop.xlane.xlu0 %1424
        %v1426 = vsel %vm711, %v693, 0.0
        %1427 = vadd.xlane.f32.xlu0 %v1426
        %v1428 = vpop.xlane.xlu0 %1427
        %v1429 = vsel %vm711, %v694, 0.0
        %1430 = vadd.xlane.f32.xlu0 %v1429
        %v1431 = vpop.xlane.xlu0 %1430
        %v1432 = vsel %vm711, %v695, 0.0
        %1433 = vadd.xlane.f32.xlu0 %v1432
        %v1434 = vpop.xlane.xlu0 %1433
        %v1435 = vsel %vm711, %v696, 0.0
        %1436 = vadd.xlane.f32.xlu0 %v1435
        %v1437 = vpop.xlane.xlu0 %1436
        %v1438 = vsel %vm711, %v697, 0.0
        %1439 = vadd.xlane.f32.xlu0 %v1438
        %v1440 = vpop.xlane.xlu0 %1439
        %v1441 = vsel %vm711, %v698, 0.0
        %1442 = vadd.xlane.f32.xlu0 %v1441
        %v1443 = vpop.xlane.xlu0 %1442
        %v1444 = vsel %vm711, %v699, 0.0
        %1445 = vadd.xlane.f32.xlu0 %v1444
        %v1446 = vpop.xlane.xlu0 %1445
        %v1447 = vsel %vm711, %v700, 0.0
        %1448 = vadd.xlane.f32.xlu0 %v1447
        %v1449 = vpop.xlane.xlu0 %1448
        %v1450 = vsel %vm711, %v701, 0.0
        %1451 = vadd.xlane.f32.xlu0 %v1450
        %v1452 = vpop.xlane.xlu0 %1451
        %v1453 = vsel %vm711, %v702, 0.0
        %1454 = vadd.xlane.f32.xlu0 %v1453
        %v1455 = vpop.xlane.xlu0 %1454
        %v1456 = vsel %vm711, %v703, 0.0
        %1457 = vadd.xlane.f32.xlu0 %v1456
        %v1458 = vpop.xlane.xlu0 %1457
        %v1459 = vsel %vm711, %v704, 0.0
        %1460 = vadd.xlane.f32.xlu0 %v1459
        %v1461 = vpop.xlane.xlu0 %1460
        %v1462 = vsel %vm711, %v705, 0.0
        %1463 = vadd.xlane.f32.xlu0 %v1462
        %v1464 = vpop.xlane.xlu0 %1463
        %v1465 = vsel %vm711, %v706, 0.0
        %1466 = vadd.xlane.f32.xlu0 %v1465
        %v1467 = vpop.xlane.xlu0 %1466
        %v1468 = vsel %vm711, %v707, 0.0
        %1469 = vadd.xlane.f32.xlu0 %v1468
        %v1470 = vpop.xlane.xlu0 %1469
        %v1471 = vsel %vm711, %v708, 0.0
        %1472 = vadd.xlane.f32.xlu0 %v1471
        %v1473 = vpop.xlane.xlu0 %1472
        %v1474 = vsel %vm711, %v709, 0.0
        %1475 = vadd.xlane.f32.xlu0 %v1474
        %v1476 = vpop.xlane.xlu0 %1475
        %v1477 = vsel %vm711, %v710, 0.0
        %1478 = vadd.xlane.f32.xlu0 %v1477
        %v1479 = vpop.xlane.xlu0 %1478
        %s1480 = sld [smem:[#allocation2]]
        %v1481 = vstv %s1480
        %v1482 = vadd.f32 %v714, %v1481
        %v1483 = vadd.f32 %v717, %v1481
        %v1484 = vadd.f32 %v720, %v1481
        %v1485 = vadd.f32 %v723, %v1481
        %v1486 = vadd.f32 %v726, %v1481
        %v1487 = vadd.f32 %v729, %v1481
        %v1488 = vadd.f32 %v732, %v1481
        %v1489 = vadd.f32 %v735, %v1481
        %v1490 = vadd.f32 %v738, %v1481
        %v1491 = vadd.f32 %v741, %v1481
        %v1492 = vadd.f32 %v744, %v1481
        %v1493 = vadd.f32 %v747, %v1481
        %v1494 = vadd.f32 %v750, %v1481
        %v1495 = vadd.f32 %v753, %v1481
        %v1496 = vadd.f32 %v756, %v1481
        %v1497 = vadd.f32 %v759, %v1481
        %v1498 = vadd.f32 %v762, %v1481
        %v1499 = vadd.f32 %v765, %v1481
        %v1500 = vadd.f32 %v768, %v1481
        %v1501 = vadd.f32 %v771, %v1481
        %v1502 = vadd.f32 %v774, %v1481
        %v1503 = vadd.f32 %v777, %v1481
        %v1504 = vadd.f32 %v780, %v1481
        %v1505 = vadd.f32 %v783, %v1481
        %v1506 = vadd.f32 %v786, %v1481
        %v1507 = vadd.f32 %v789, %v1481
        %v1508 = vadd.f32 %v792, %v1481
        %v1509 = vadd.f32 %v795, %v1481
        %v1510 = vadd.f32 %v798, %v1481
        %v1511 = vadd.f32 %v801, %v1481
        %v1512 = vadd.f32 %v804, %v1481
        %v1513 = vadd.f32 %v807, %v1481
        %v1514 = vadd.f32 %v810, %v1481
        %v1515 = vadd.f32 %v813, %v1481
        %v1516 = vadd.f32 %v816, %v1481
        %v1517 = vadd.f32 %v819, %v1481
        %v1518 = vadd.f32 %v822, %v1481
        %v1519 = vadd.f32 %v825, %v1481
        %v1520 = vadd.f32 %v828, %v1481
        %v1521 = vadd.f32 %v831, %v1481
        %v1522 = vadd.f32 %v834, %v1481
        %v1523 = vadd.f32 %v837, %v1481
        %v1524 = vadd.f32 %v840, %v1481
        %v1525 = vadd.f32 %v843, %v1481
        %v1526 = vadd.f32 %v846, %v1481
        %v1527 = vadd.f32 %v849, %v1481
        %v1528 = vadd.f32 %v852, %v1481
        %v1529 = vadd.f32 %v855, %v1481
        %v1530 = vadd.f32 %v858, %v1481
        %v1531 = vadd.f32 %v861, %v1481
        %v1532 = vadd.f32 %v864, %v1481
        %v1533 = vadd.f32 %v867, %v1481
        %v1534 = vadd.f32 %v870, %v1481
        %v1535 = vadd.f32 %v873, %v1481
        %v1536 = vadd.f32 %v876, %v1481
        %v1537 = vadd.f32 %v879, %v1481
        %v1538 = vadd.f32 %v882, %v1481
        %v1539 = vadd.f32 %v885, %v1481
        %v1540 = vadd.f32 %v888, %v1481
        %v1541 = vadd.f32 %v891, %v1481
        %v1542 = vadd.f32 %v894, %v1481
        %v1543 = vadd.f32 %v897, %v1481
        %v1544 = vadd.f32 %v900, %v1481
        %v1545 = vadd.f32 %v903, %v1481
        %v1546 = vadd.f32 %v906, %v1481
        %v1547 = vadd.f32 %v909, %v1481
        %v1548 = vadd.f32 %v912, %v1481
        %v1549 = vadd.f32 %v915, %v1481
        %v1550 = vadd.f32 %v918, %v1481
        %v1551 = vadd.f32 %v921, %v1481
        %v1552 = vadd.f32 %v924, %v1481
        %v1553 = vadd.f32 %v927, %v1481
        %v1554 = vadd.f32 %v930, %v1481
        %v1555 = vadd.f32 %v933, %v1481
        %v1556 = vadd.f32 %v936, %v1481
        %v1557 = vadd.f32 %v939, %v1481
        %v1558 = vadd.f32 %v942, %v1481
        %v1559 = vadd.f32 %v945, %v1481
        %v1560 = vadd.f32 %v948, %v1481
        %v1561 = vadd.f32 %v951, %v1481
        %v1562 = vadd.f32 %v954, %v1481
        %v1563 = vadd.f32 %v957, %v1481
        %v1564 = vadd.f32 %v960, %v1481
        %v1565 = vadd.f32 %v963, %v1481
        %v1566 = vadd.f32 %v966, %v1481
        %v1567 = vadd.f32 %v969, %v1481
        %v1568 = vadd.f32 %v972, %v1481
        %v1569 = vadd.f32 %v975, %v1481
        %v1570 = vadd.f32 %v978, %v1481
        %v1571 = vadd.f32 %v981, %v1481
        %v1572 = vadd.f32 %v984, %v1481
        %v1573 = vadd.f32 %v987, %v1481
        %v1574 = vadd.f32 %v990, %v1481
        %v1575 = vadd.f32 %v993, %v1481
        %v1576 = vadd.f32 %v996, %v1481
        %v1577 = vadd.f32 %v999, %v1481
        %v1578 = vadd.f32 %v1002, %v1481
        %v1579 = vadd.f32 %v1005, %v1481
        %v1580 = vadd.f32 %v1008, %v1481
        %v1581 = vadd.f32 %v1011, %v1481
        %v1582 = vadd.f32 %v1014, %v1481
        %v1583 = vadd.f32 %v1017, %v1481
        %v1584 = vadd.f32 %v1020, %v1481
        %v1585 = vadd.f32 %v1023, %v1481
        %v1586 = vadd.f32 %v1026, %v1481
        %v1587 = vadd.f32 %v1029, %v1481
        %v1588 = vadd.f32 %v1032, %v1481
        %v1589 = vadd.f32 %v1035, %v1481
        %v1590 = vadd.f32 %v1038, %v1481
        %v1591 = vadd.f32 %v1041, %v1481
        %v1592 = vadd.f32 %v1044, %v1481
        %v1593 = vadd.f32 %v1047, %v1481
        %v1594 = vadd.f32 %v1050, %v1481
        %v1595 = vadd.f32 %v1053, %v1481
        %v1596 = vadd.f32 %v1056, %v1481
        %v1597 = vadd.f32 %v1059, %v1481
        %v1598 = vadd.f32 %v1062, %v1481
        %v1599 = vadd.f32 %v1065, %v1481
        %v1600 = vadd.f32 %v1068, %v1481
        %v1601 = vadd.f32 %v1071, %v1481
        %v1602 = vadd.f32 %v1074, %v1481
        %v1603 = vadd.f32 %v1077, %v1481
        %v1604 = vadd.f32 %v1080, %v1481
        %v1605 = vadd.f32 %v1083, %v1481
        %v1606 = vadd.f32 %v1086, %v1481
        %v1607 = vadd.f32 %v1089, %v1481
        %v1608 = vadd.f32 %v1092, %v1481
        %v1609 = vadd.f32 %v1095, %v1481
        %v1610 = vadd.f32 %v1098, %v1481
        %v1611 = vadd.f32 %v1101, %v1481
        %v1612 = vadd.f32 %v1104, %v1481
        %v1613 = vadd.f32 %v1107, %v1481
        %v1614 = vadd.f32 %v1110, %v1481
        %v1615 = vadd.f32 %v1113, %v1481
        %v1616 = vadd.f32 %v1116, %v1481
        %v1617 = vadd.f32 %v1119, %v1481
        %v1618 = vadd.f32 %v1122, %v1481
        %v1619 = vadd.f32 %v1125, %v1481
        %v1620 = vadd.f32 %v1128, %v1481
        %v1621 = vadd.f32 %v1131, %v1481
        %v1622 = vadd.f32 %v1134, %v1481
        %v1623 = vadd.f32 %v1137, %v1481
        %v1624 = vadd.f32 %v1140, %v1481
        %v1625 = vadd.f32 %v1143, %v1481
        %v1626 = vadd.f32 %v1146, %v1481
        %v1627 = vadd.f32 %v1149, %v1481
        %v1628 = vadd.f32 %v1152, %v1481
        %v1629 = vadd.f32 %v1155, %v1481
        %v1630 = vadd.f32 %v1158, %v1481
        %v1631 = vadd.f32 %v1161, %v1481
        %v1632 = vadd.f32 %v1164, %v1481
        %v1633 = vadd.f32 %v1167, %v1481
        %v1634 = vadd.f32 %v1170, %v1481
        %v1635 = vadd.f32 %v1173, %v1481
        %v1636 = vadd.f32 %v1176, %v1481
        %v1637 = vadd.f32 %v1179, %v1481
        %v1638 = vadd.f32 %v1182, %v1481
        %v1639 = vadd.f32 %v1185, %v1481
        %v1640 = vadd.f32 %v1188, %v1481
        %v1641 = vadd.f32 %v1191, %v1481
        %v1642 = vadd.f32 %v1194, %v1481
        %v1643 = vadd.f32 %v1197, %v1481
        %v1644 = vadd.f32 %v1200, %v1481
        %v1645 = vadd.f32 %v1203, %v1481
        %v1646 = vadd.f32 %v1206, %v1481
        %v1647 = vadd.f32 %v1209, %v1481
        %v1648 = vadd.f32 %v1212, %v1481
        %v1649 = vadd.f32 %v1215, %v1481
        %v1650 = vadd.f32 %v1218, %v1481
        %v1651 = vadd.f32 %v1221, %v1481
        %v1652 = vadd.f32 %v1224, %v1481
        %v1653 = vadd.f32 %v1227, %v1481
        %v1654 = vadd.f32 %v1230, %v1481
        %v1655 = vadd.f32 %v1233, %v1481
        %v1656 = vadd.f32 %v1236, %v1481
        %v1657 = vadd.f32 %v1239, %v1481
        %v1658 = vadd.f32 %v1242, %v1481
        %v1659 = vadd.f32 %v1245, %v1481
        %v1660 = vadd.f32 %v1248, %v1481
        %v1661 = vadd.f32 %v1251, %v1481
        %v1662 = vadd.f32 %v1254, %v1481
        %v1663 = vadd.f32 %v1257, %v1481
        %v1664 = vadd.f32 %v1260, %v1481
        %v1665 = vadd.f32 %v1263, %v1481
        %v1666 = vadd.f32 %v1266, %v1481
        %v1667 = vadd.f32 %v1269, %v1481
        %v1668 = vadd.f32 %v1272, %v1481
        %v1669 = vadd.f32 %v1275, %v1481
        %v1670 = vadd.f32 %v1278, %v1481
        %v1671 = vadd.f32 %v1281, %v1481
        %v1672 = vadd.f32 %v1284, %v1481
        %v1673 = vadd.f32 %v1287, %v1481
        %v1674 = vadd.f32 %v1290, %v1481
        %v1675 = vadd.f32 %v1293, %v1481
        %v1676 = vadd.f32 %v1296, %v1481
        %v1677 = vadd.f32 %v1299, %v1481
        %v1678 = vadd.f32 %v1302, %v1481
        %v1679 = vadd.f32 %v1305, %v1481
        %v1680 = vadd.f32 %v1308, %v1481
        %v1681 = vadd.f32 %v1311, %v1481
        %v1682 = vadd.f32 %v1314, %v1481
        %v1683 = vadd.f32 %v1317, %v1481
        %v1684 = vadd.f32 %v1320, %v1481
        %v1685 = vadd.f32 %v1323, %v1481
        %v1686 = vadd.f32 %v1326, %v1481
        %v1687 = vadd.f32 %v1329, %v1481
        %v1688 = vadd.f32 %v1332, %v1481
        %v1689 = vadd.f32 %v1335, %v1481
        %v1690 = vadd.f32 %v1338, %v1481
        %v1691 = vadd.f32 %v1341, %v1481
        %v1692 = vadd.f32 %v1344, %v1481
        %v1693 = vadd.f32 %v1347, %v1481
        %v1694 = vadd.f32 %v1350, %v1481
        %v1695 = vadd.f32 %v1353, %v1481
        %v1696 = vadd.f32 %v1356, %v1481
        %v1697 = vadd.f32 %v1359, %v1481
        %v1698 = vadd.f32 %v1362, %v1481
        %v1699 = vadd.f32 %v1365, %v1481
        %v1700 = vadd.f32 %v1368, %v1481
        %v1701 = vadd.f32 %v1371, %v1481
        %v1702 = vadd.f32 %v1374, %v1481
        %v1703 = vadd.f32 %v1377, %v1481
        %v1704 = vadd.f32 %v1380, %v1481
        %v1705 = vadd.f32 %v1383, %v1481
        %v1706 = vadd.f32 %v1386, %v1481
        %v1707 = vadd.f32 %v1389, %v1481
        %v1708 = vadd.f32 %v1392, %v1481
        %v1709 = vadd.f32 %v1395, %v1481
        %v1710 = vadd.f32 %v1398, %v1481
        %v1711 = vadd.f32 %v1401, %v1481
        %v1712 = vadd.f32 %v1404, %v1481
        %v1713 = vadd.f32 %v1407, %v1481
        %v1714 = vadd.f32 %v1410, %v1481
        %v1715 = vadd.f32 %v1413, %v1481
        %v1716 = vadd.f32 %v1416, %v1481
        %v1717 = vadd.f32 %v1419, %v1481
        %v1718 = vadd.f32 %v1422, %v1481
        %v1719 = vadd.f32 %v1425, %v1481
        %v1720 = vadd.f32 %v1428, %v1481
        %v1721 = vadd.f32 %v1431, %v1481
        %v1722 = vadd.f32 %v1434, %v1481
        %v1723 = vadd.f32 %v1437, %v1481
        %v1724 = vadd.f32 %v1440, %v1481
        %v1725 = vadd.f32 %v1443, %v1481
        %v1726 = vadd.f32 %v1446, %v1481
        %v1727 = vadd.f32 %v1449, %v1481
        %v1728 = vadd.f32 %v1452, %v1481
        %v1729 = vadd.f32 %v1455, %v1481
        %v1730 = vadd.f32 %v1458, %v1481
        %v1731 = vadd.f32 %v1461, %v1481
        %v1732 = vadd.f32 %v1464, %v1481
        %v1733 = vadd.f32 %v1467, %v1481
        %v1734 = vadd.f32 %v1470, %v1481
        %v1735 = vadd.f32 %v1473, %v1481
        %v1736 = vadd.f32 %v1476, %v1481
        %v1737 = vadd.f32 %v1479, %v1481
        %v1994 = vlaneseq
        %v1995 = vand.u32 %v1994, 127
        %v1996 = vlaneseq
        %v1997 = vshrl.u32 %v1996, 7
        %v1998 = vsub.s32 %v1995, %v1997
        %v1999 = vrot.slane %v1482, %v1998
        %v2000 = vadd.s32 %v1995, 4294967288
        %v2001 = vlaneseq
        %v2002 = vshrl.u32 %v2001, 7
        %v2003 = vsub.s32 %v2000, %v2002
        %v2004 = vrot.slane %v1483, %v2003
        %vm2005 = vcmask 130112
        %v2006 = vsel %vm2005, %v2004, %v1999
        %v2007 = vadd.s32 %v1995, 4294967280
        %v2008 = vlaneseq
        %v2009 = vshrl.u32 %v2008, 7
        %v2010 = vsub.s32 %v2007, %v2009
        %v2011 = vrot.slane %v1484, %v2010
        %vm2012 = vcmask 195712
        %v2013 = vsel %vm2012, %v2011, %v2006
        %v2014 = vadd.s32 %v1995, 4294967272
        %v2015 = vlaneseq
        %v2016 = vshrl.u32 %v2015, 7
        %v2017 = vsub.s32 %v2014, %v2016
        %v2018 = vrot.slane %v1485, %v2017
        %vm2019 = vcmask 261312
        %v2020 = vsel %vm2019, %v2018, %v2013
        %v2021 = vadd.s32 %v1995, 4294967264
        %v2022 = vlaneseq
        %v2023 = vshrl.u32 %v2022, 7
        %v2024 = vsub.s32 %v2021, %v2023
        %v2025 = vrot.slane %v1486, %v2024
        %vm2026 = vcmask 326912
        %v2027 = vsel %vm2026, %v2025, %v2020
        %v2028 = vadd.s32 %v1995, 4294967256
        %v2029 = vlaneseq
        %v2030 = vshrl.u32 %v2029, 7
        %v2031 = vsub.s32 %v2028, %v2030
        %v2032 = vrot.slane %v1487, %v2031
        %vm2033 = vcmask 392512
        %v2034 = vsel %vm2033, %v2032, %v2027
        %v2035 = vadd.s32 %v1995, 4294967248
        %v2036 = vlaneseq
        %v2037 = vshrl.u32 %v2036, 7
        %v2038 = vsub.s32 %v2035, %v2037
        %v2039 = vrot.slane %v1488, %v2038
        %vm2040 = vcmask 458112
        %v2041 = vsel %vm2040, %v2039, %v2034
        %v2042 = vadd.s32 %v1995, 4294967240
        %v2043 = vlaneseq
        %v2044 = vshrl.u32 %v2043, 7
        %v2045 = vsub.s32 %v2042, %v2044
        %v2046 = vrot.slane %v1489, %v2045
        %vm2047 = vcmask 523712
        %v2048 = vsel %vm2047, %v2046, %v2041
        %v2049 = vadd.s32 %v1995, 4294967232
        %v2050 = vlaneseq
        %v2051 = vshrl.u32 %v2050, 7
        %v2052 = vsub.s32 %v2049, %v2051
        %v2053 = vrot.slane %v1490, %v2052
        %vm2054 = vcmask 589312
        %v2055 = vsel %vm2054, %v2053, %v2048
        %v2056 = vadd.s32 %v1995, 4294967224
        %v2057 = vlaneseq
        %v2058 = vshrl.u32 %v2057, 7
        %v2059 = vsub.s32 %v2056, %v2058
        %v2060 = vrot.slane %v1491, %v2059
        %vm2061 = vcmask 654912
        %v2062 = vsel %vm2061, %v2060, %v2055
        %v2063 = vadd.s32 %v1995, 4294967216
        %v2064 = vlaneseq
        %v2065 = vshrl.u32 %v2064, 7
        %v2066 = vsub.s32 %v2063, %v2065
        %v2067 = vrot.slane %v1492, %v2066
        %vm2068 = vcmask 720512
        %v2069 = vsel %vm2068, %v2067, %v2062
        %v2070 = vadd.s32 %v1995, 4294967208
        %v2071 = vlaneseq
        %v2072 = vshrl.u32 %v2071, 7
        %v2073 = vsub.s32 %v2070, %v2072
        %v2074 = vrot.slane %v1493, %v2073
        %vm2075 = vcmask 786112
        %v2076 = vsel %vm2075, %v2074, %v2069
        %v2077 = vadd.s32 %v1995, 4294967200
        %v2078 = vlaneseq
        %v2079 = vshrl.u32 %v2078, 7
        %v2080 = vsub.s32 %v2077, %v2079
        %v2081 = vrot.slane %v1494, %v2080
        %vm2082 = vcmask 851712
        %v2083 = vsel %vm2082, %v2081, %v2076
        %v2084 = vadd.s32 %v1995, 4294967192
        %v2085 = vlaneseq
        %v2086 = vshrl.u32 %v2085, 7
        %v2087 = vsub.s32 %v2084, %v2086
        %v2088 = vrot.slane %v1495, %v2087
        %vm2089 = vcmask 917312
        %v2090 = vsel %vm2089, %v2088, %v2083
        %v2091 = vadd.s32 %v1995, 4294967184
        %v2092 = vlaneseq
        %v2093 = vshrl.u32 %v2092, 7
        %v2094 = vsub.s32 %v2091, %v2093
        %v2095 = vrot.slane %v1496, %v2094
        %vm2096 = vcmask 982912
        %v2097 = vsel %vm2096, %v2095, %v2090
        %v2098 = vadd.s32 %v1995, 4294967176
        %v2099 = vlaneseq
        %v2100 = vshrl.u32 %v2099, 7
        %v2101 = vsub.s32 %v2098, %v2100
        %v2102 = vrot.slane %v1497, %v2101
        %vm2103 = vcmask 1048512
        %v2104 = vsel %vm2103, %v2102, %v2097
        %v2105 = vlaneseq
        %v2106 = vshrl.u32 %v2105, 7
        %v2107 = vsub.s32 %v1995, %v2106
        %v2108 = vrot.slane %v1498, %v2107
        %v2109 = vlaneseq
        %v2110 = vshrl.u32 %v2109, 7
        %v2111 = vsub.s32 %v2000, %v2110
        %v2112 = vrot.slane %v1499, %v2111
        %v2113 = vsel %vm2005, %v2112, %v2108
        %v2114 = vlaneseq
        %v2115 = vshrl.u32 %v2114, 7
        %v2116 = vsub.s32 %v2007, %v2115
        %v2117 = vrot.slane %v1500, %v2116
        %v2118 = vsel %vm2012, %v2117, %v2113
        %v2119 = vlaneseq
        %v2120 = vshrl.u32 %v2119, 7
        %v2121 = vsub.s32 %v2014, %v2120
        %v2122 = vrot.slane %v1501, %v2121
        %v2123 = vsel %vm2019, %v2122, %v2118
        %v2124 = vlaneseq
        %v2125 = vshrl.u32 %v2124, 7
        %v2126 = vsub.s32 %v2021, %v2125
        %v2127 = vrot.slane %v1502, %v2126
        %v2128 = vsel %vm2026, %v2127, %v2123
        %v2129 = vlaneseq
        %v2130 = vshrl.u32 %v2129, 7
        %v2131 = vsub.s32 %v2028, %v2130
        %v2132 = vrot.slane %v1503, %v2131
        %v2133 = vsel %vm2033, %v2132, %v2128
        %v2134 = vlaneseq
        %v2135 = vshrl.u32 %v2134, 7
        %v2136 = vsub.s32 %v2035, %v2135
        %v2137 = vrot.slane %v1504, %v2136
        %v2138 = vsel %vm2040, %v2137, %v2133
        %v2139 = vlaneseq
        %v2140 = vshrl.u32 %v2139, 7
        %v2141 = vsub.s32 %v2042, %v2140
        %v2142 = vrot.slane %v1505, %v2141
        %v2143 = vsel %vm2047, %v2142, %v2138
        %v2144 = vlaneseq
        %v2145 = vshrl.u32 %v2144, 7
        %v2146 = vsub.s32 %v2049, %v2145
        %v2147 = vrot.slane %v1506, %v2146
        %v2148 = vsel %vm2054, %v2147, %v2143
        %v2149 = vlaneseq
        %v2150 = vshrl.u32 %v2149, 7
        %v2151 = vsub.s32 %v2056, %v2150
        %v2152 = vrot.slane %v1507, %v2151
        %v2153 = vsel %vm2061, %v2152, %v2148
        %v2154 = vlaneseq
        %v2155 = vshrl.u32 %v2154, 7
        %v2156 = vsub.s32 %v2063, %v2155
        %v2157 = vrot.slane %v1508, %v2156
        %v2158 = vsel %vm2068, %v2157, %v2153
        %v2159 = vlaneseq
        %v2160 = vshrl.u32 %v2159, 7
        %v2161 = vsub.s32 %v2070, %v2160
        %v2162 = vrot.slane %v1509, %v2161
        %v2163 = vsel %vm2075, %v2162, %v2158
        %v2164 = vlaneseq
        %v2165 = vshrl.u32 %v2164, 7
        %v2166 = vsub.s32 %v2077, %v2165
        %v2167 = vrot.slane %v1510, %v2166
        %v2168 = vsel %vm2082, %v2167, %v2163
        %v2169 = vlaneseq
        %v2170 = vshrl.u32 %v2169, 7
        %v2171 = vsub.s32 %v2084, %v2170
        %v2172 = vrot.slane %v1511, %v2171
        %v2173 = vsel %vm2089, %v2172, %v2168
        %v2174 = vlaneseq
        %v2175 = vshrl.u32 %v2174, 7
        %v2176 = vsub.s32 %v2091, %v2175
        %v2177 = vrot.slane %v1512, %v2176
        %v2178 = vsel %vm2096, %v2177, %v2173
        %v2179 = vlaneseq
        %v2180 = vshrl.u32 %v2179, 7
        %v2181 = vsub.s32 %v2098, %v2180
        %v2182 = vrot.slane %v1513, %v2181
        %v2183 = vsel %vm2103, %v2182, %v2178
        %v2184 = vlaneseq
        %v2185 = vshrl.u32 %v2184, 7
        %v2186 = vsub.s32 %v1995, %v2185
        %v2187 = vrot.slane %v1514, %v2186
        %v2188 = vlaneseq
        %v2189 = vshrl.u32 %v2188, 7
        %v2190 = vsub.s32 %v2000, %v2189
        %v2191 = vrot.slane %v1515, %v2190
        %v2192 = vsel %vm2005, %v2191, %v2187
        %v2193 = vlaneseq
        %v2194 = vshrl.u32 %v2193, 7
        %v2195 = vsub.s32 %v2007, %v2194
        %v2196 = vrot.slane %v1516, %v2195
        %v2197 = vsel %vm2012, %v2196, %v2192
        %v2198 = vlaneseq
        %v2199 = vshrl.u32 %v2198, 7
        %v2200 = vsub.s32 %v2014, %v2199
        %v2201 = vrot.slane %v1517, %v2200
        %v2202 = vsel %vm2019, %v2201, %v2197
        %v2203 = vlaneseq
        %v2204 = vshrl.u32 %v2203, 7
        %v2205 = vsub.s32 %v2021, %v2204
        %v2206 = vrot.slane %v1518, %v2205
        %v2207 = vsel %vm2026, %v2206, %v2202
        %v2208 = vlaneseq
        %v2209 = vshrl.u32 %v2208, 7
        %v2210 = vsub.s32 %v2028, %v2209
        %v2211 = vrot.slane %v1519, %v2210
        %v2212 = vsel %vm2033, %v2211, %v2207
        %v2213 = vlaneseq
        %v2214 = vshrl.u32 %v2213, 7
        %v2215 = vsub.s32 %v2035, %v2214
        %v2216 = vrot.slane %v1520, %v2215
        %v2217 = vsel %vm2040, %v2216, %v2212
        %v2218 = vlaneseq
        %v2219 = vshrl.u32 %v2218, 7
        %v2220 = vsub.s32 %v2042, %v2219
        %v2221 = vrot.slane %v1521, %v2220
        %v2222 = vsel %vm2047, %v2221, %v2217
        %v2223 = vlaneseq
        %v2224 = vshrl.u32 %v2223, 7
        %v2225 = vsub.s32 %v2049, %v2224
        %v2226 = vrot.slane %v1522, %v2225
        %v2227 = vsel %vm2054, %v2226, %v2222
        %v2228 = vlaneseq
        %v2229 = vshrl.u32 %v2228, 7
        %v2230 = vsub.s32 %v2056, %v2229
        %v2231 = vrot.slane %v1523, %v2230
        %v2232 = vsel %vm2061, %v2231, %v2227
        %v2233 = vlaneseq
        %v2234 = vshrl.u32 %v2233, 7
        %v2235 = vsub.s32 %v2063, %v2234
        %v2236 = vrot.slane %v1524, %v2235
        %v2237 = vsel %vm2068, %v2236, %v2232
        %v2238 = vlaneseq
        %v2239 = vshrl.u32 %v2238, 7
        %v2240 = vsub.s32 %v2070, %v2239
        %v2241 = vrot.slane %v1525, %v2240
        %v2242 = vsel %vm2075, %v2241, %v2237
        %v2243 = vlaneseq
        %v2244 = vshrl.u32 %v2243, 7
        %v2245 = vsub.s32 %v2077, %v2244
        %v2246 = vrot.slane %v1526, %v2245
        %v2247 = vsel %vm2082, %v2246, %v2242
        %v2248 = vlaneseq
        %v2249 = vshrl.u32 %v2248, 7
        %v2250 = vsub.s32 %v2084, %v2249
        %v2251 = vrot.slane %v1527, %v2250
        %v2252 = vsel %vm2089, %v2251, %v2247
        %v2253 = vlaneseq
        %v2254 = vshrl.u32 %v2253, 7
        %v2255 = vsub.s32 %v2091, %v2254
        %v2256 = vrot.slane %v1528, %v2255
        %v2257 = vsel %vm2096, %v2256, %v2252
        %v2258 = vlaneseq
        %v2259 = vshrl.u32 %v2258, 7
        %v2260 = vsub.s32 %v2098, %v2259
        %v2261 = vrot.slane %v1529, %v2260
        %v2262 = vsel %vm2103, %v2261, %v2257
        %v2263 = vlaneseq
        %v2264 = vshrl.u32 %v2263, 7
        %v2265 = vsub.s32 %v1995, %v2264
        %v2266 = vrot.slane %v1530, %v2265
        %v2267 = vlaneseq
        %v2268 = vshrl.u32 %v2267, 7
        %v2269 = vsub.s32 %v2000, %v2268
        %v2270 = vrot.slane %v1531, %v2269
        %v2271 = vsel %vm2005, %v2270, %v2266
        %v2272 = vlaneseq
        %v2273 = vshrl.u32 %v2272, 7
        %v2274 = vsub.s32 %v2007, %v2273
        %v2275 = vrot.slane %v1532, %v2274
        %v2276 = vsel %vm2012, %v2275, %v2271
        %v2277 = vlaneseq
        %v2278 = vshrl.u32 %v2277, 7
        %v2279 = vsub.s32 %v2014, %v2278
        %v2280 = vrot.slane %v1533, %v2279
        %v2281 = vsel %vm2019, %v2280, %v2276
        %v2282 = vlaneseq
        %v2283 = vshrl.u32 %v2282, 7
        %v2284 = vsub.s32 %v2021, %v2283
        %v2285 = vrot.slane %v1534, %v2284
        %v2286 = vsel %vm2026, %v2285, %v2281
        %v2287 = vlaneseq
        %v2288 = vshrl.u32 %v2287, 7
        %v2289 = vsub.s32 %v2028, %v2288
        %v2290 = vrot.slane %v1535, %v2289
        %v2291 = vsel %vm2033, %v2290, %v2286
        %v2292 = vlaneseq
        %v2293 = vshrl.u32 %v2292, 7
        %v2294 = vsub.s32 %v2035, %v2293
        %v2295 = vrot.slane %v1536, %v2294
        %v2296 = vsel %vm2040, %v2295, %v2291
        %v2297 = vlaneseq
        %v2298 = vshrl.u32 %v2297, 7
        %v2299 = vsub.s32 %v2042, %v2298
        %v2300 = vrot.slane %v1537, %v2299
        %v2301 = vsel %vm2047, %v2300, %v2296
        %v2302 = vlaneseq
        %v2303 = vshrl.u32 %v2302, 7
        %v2304 = vsub.s32 %v2049, %v2303
        %v2305 = vrot.slane %v1538, %v2304
        %v2306 = vsel %vm2054, %v2305, %v2301
        %v2307 = vlaneseq
        %v2308 = vshrl.u32 %v2307, 7
        %v2309 = vsub.s32 %v2056, %v2308
        %v2310 = vrot.slane %v1539, %v2309
        %v2311 = vsel %vm2061, %v2310, %v2306
        %v2312 = vlaneseq
        %v2313 = vshrl.u32 %v2312, 7
        %v2314 = vsub.s32 %v2063, %v2313
        %v2315 = vrot.slane %v1540, %v2314
        %v2316 = vsel %vm2068, %v2315, %v2311
        %v2317 = vlaneseq
        %v2318 = vshrl.u32 %v2317, 7
        %v2319 = vsub.s32 %v2070, %v2318
        %v2320 = vrot.slane %v1541, %v2319
        %v2321 = vsel %vm2075, %v2320, %v2316
        %v2322 = vlaneseq
        %v2323 = vshrl.u32 %v2322, 7
        %v2324 = vsub.s32 %v2077, %v2323
        %v2325 = vrot.slane %v1542, %v2324
        %v2326 = vsel %vm2082, %v2325, %v2321
        %v2327 = vlaneseq
        %v2328 = vshrl.u32 %v2327, 7
        %v2329 = vsub.s32 %v2084, %v2328
        %v2330 = vrot.slane %v1543, %v2329
        %v2331 = vsel %vm2089, %v2330, %v2326
        %v2332 = vlaneseq
        %v2333 = vshrl.u32 %v2332, 7
        %v2334 = vsub.s32 %v2091, %v2333
        %v2335 = vrot.slane %v1544, %v2334
        %v2336 = vsel %vm2096, %v2335, %v2331
        %v2337 = vlaneseq
        %v2338 = vshrl.u32 %v2337, 7
        %v2339 = vsub.s32 %v2098, %v2338
        %v2340 = vrot.slane %v1545, %v2339
        %v2341 = vsel %vm2103, %v2340, %v2336
        %v2342 = vlaneseq
        %v2343 = vshrl.u32 %v2342, 7
        %v2344 = vsub.s32 %v1995, %v2343
        %v2345 = vrot.slane %v1546, %v2344
        %v2346 = vlaneseq
        %v2347 = vshrl.u32 %v2346, 7
        %v2348 = vsub.s32 %v2000, %v2347
        %v2349 = vrot.slane %v1547, %v2348
        %v2350 = vsel %vm2005, %v2349, %v2345
        %v2351 = vlaneseq
        %v2352 = vshrl.u32 %v2351, 7
        %v2353 = vsub.s32 %v2007, %v2352
        %v2354 = vrot.slane %v1548, %v2353
        %v2355 = vsel %vm2012, %v2354, %v2350
        %v2356 = vlaneseq
        %v2357 = vshrl.u32 %v2356, 7
        %v2358 = vsub.s32 %v2014, %v2357
        %v2359 = vrot.slane %v1549, %v2358
        %v2360 = vsel %vm2019, %v2359, %v2355
        %v2361 = vlaneseq
        %v2362 = vshrl.u32 %v2361, 7
        %v2363 = vsub.s32 %v2021, %v2362
        %v2364 = vrot.slane %v1550, %v2363
        %v2365 = vsel %vm2026, %v2364, %v2360
        %v2366 = vlaneseq
        %v2367 = vshrl.u32 %v2366, 7
        %v2368 = vsub.s32 %v2028, %v2367
        %v2369 = vrot.slane %v1551, %v2368
        %v2370 = vsel %vm2033, %v2369, %v2365
        %v2371 = vlaneseq
        %v2372 = vshrl.u32 %v2371, 7
        %v2373 = vsub.s32 %v2035, %v2372
        %v2374 = vrot.slane %v1552, %v2373
        %v2375 = vsel %vm2040, %v2374, %v2370
        %v2376 = vlaneseq
        %v2377 = vshrl.u32 %v2376, 7
        %v2378 = vsub.s32 %v2042, %v2377
        %v2379 = vrot.slane %v1553, %v2378
        %v2380 = vsel %vm2047, %v2379, %v2375
        %v2381 = vlaneseq
        %v2382 = vshrl.u32 %v2381, 7
        %v2383 = vsub.s32 %v2049, %v2382
        %v2384 = vrot.slane %v1554, %v2383
        %v2385 = vsel %vm2054, %v2384, %v2380
        %v2386 = vlaneseq
        %v2387 = vshrl.u32 %v2386, 7
        %v2388 = vsub.s32 %v2056, %v2387
        %v2389 = vrot.slane %v1555, %v2388
        %v2390 = vsel %vm2061, %v2389, %v2385
        %v2391 = vlaneseq
        %v2392 = vshrl.u32 %v2391, 7
        %v2393 = vsub.s32 %v2063, %v2392
        %v2394 = vrot.slane %v1556, %v2393
        %v2395 = vsel %vm2068, %v2394, %v2390
        %v2396 = vlaneseq
        %v2397 = vshrl.u32 %v2396, 7
        %v2398 = vsub.s32 %v2070, %v2397
        %v2399 = vrot.slane %v1557, %v2398
        %v2400 = vsel %vm2075, %v2399, %v2395
        %v2401 = vlaneseq
        %v2402 = vshrl.u32 %v2401, 7
        %v2403 = vsub.s32 %v2077, %v2402
        %v2404 = vrot.slane %v1558, %v2403
        %v2405 = vsel %vm2082, %v2404, %v2400
        %v2406 = vlaneseq
        %v2407 = vshrl.u32 %v2406, 7
        %v2408 = vsub.s32 %v2084, %v2407
        %v2409 = vrot.slane %v1559, %v2408
        %v2410 = vsel %vm2089, %v2409, %v2405
        %v2411 = vlaneseq
        %v2412 = vshrl.u32 %v2411, 7
        %v2413 = vsub.s32 %v2091, %v2412
        %v2414 = vrot.slane %v1560, %v2413
        %v2415 = vsel %vm2096, %v2414, %v2410
        %v2416 = vlaneseq
        %v2417 = vshrl.u32 %v2416, 7
        %v2418 = vsub.s32 %v2098, %v2417
        %v2419 = vrot.slane %v1561, %v2418
        %v2420 = vsel %vm2103, %v2419, %v2415
        %v2421 = vlaneseq
        %v2422 = vshrl.u32 %v2421, 7
        %v2423 = vsub.s32 %v1995, %v2422
        %v2424 = vrot.slane %v1562, %v2423
        %v2425 = vlaneseq
        %v2426 = vshrl.u32 %v2425, 7
        %v2427 = vsub.s32 %v2000, %v2426
        %v2428 = vrot.slane %v1563, %v2427
        %v2429 = vsel %vm2005, %v2428, %v2424
        %v2430 = vlaneseq
        %v2431 = vshrl.u32 %v2430, 7
        %v2432 = vsub.s32 %v2007, %v2431
        %v2433 = vrot.slane %v1564, %v2432
        %v2434 = vsel %vm2012, %v2433, %v2429
        %v2435 = vlaneseq
        %v2436 = vshrl.u32 %v2435, 7
        %v2437 = vsub.s32 %v2014, %v2436
        %v2438 = vrot.slane %v1565, %v2437
        %v2439 = vsel %vm2019, %v2438, %v2434
        %v2440 = vlaneseq
        %v2441 = vshrl.u32 %v2440, 7
        %v2442 = vsub.s32 %v2021, %v2441
        %v2443 = vrot.slane %v1566, %v2442
        %v2444 = vsel %vm2026, %v2443, %v2439
        %v2445 = vlaneseq
        %v2446 = vshrl.u32 %v2445, 7
        %v2447 = vsub.s32 %v2028, %v2446
        %v2448 = vrot.slane %v1567, %v2447
        %v2449 = vsel %vm2033, %v2448, %v2444
        %v2450 = vlaneseq
        %v2451 = vshrl.u32 %v2450, 7
        %v2452 = vsub.s32 %v2035, %v2451
        %v2453 = vrot.slane %v1568, %v2452
        %v2454 = vsel %vm2040, %v2453, %v2449
        %v2455 = vlaneseq
        %v2456 = vshrl.u32 %v2455, 7
        %v2457 = vsub.s32 %v2042, %v2456
        %v2458 = vrot.slane %v1569, %v2457
        %v2459 = vsel %vm2047, %v2458, %v2454
        %v2460 = vlaneseq
        %v2461 = vshrl.u32 %v2460, 7
        %v2462 = vsub.s32 %v2049, %v2461
        %v2463 = vrot.slane %v1570, %v2462
        %v2464 = vsel %vm2054, %v2463, %v2459
        %v2465 = vlaneseq
        %v2466 = vshrl.u32 %v2465, 7
        %v2467 = vsub.s32 %v2056, %v2466
        %v2468 = vrot.slane %v1571, %v2467
        %v2469 = vsel %vm2061, %v2468, %v2464
        %v2470 = vlaneseq
        %v2471 = vshrl.u32 %v2470, 7
        %v2472 = vsub.s32 %v2063, %v2471
        %v2473 = vrot.slane %v1572, %v2472
        %v2474 = vsel %vm2068, %v2473, %v2469
        %v2475 = vlaneseq
        %v2476 = vshrl.u32 %v2475, 7
        %v2477 = vsub.s32 %v2070, %v2476
        %v2478 = vrot.slane %v1573, %v2477
        %v2479 = vsel %vm2075, %v2478, %v2474
        %v2480 = vlaneseq
        %v2481 = vshrl.u32 %v2480, 7
        %v2482 = vsub.s32 %v2077, %v2481
        %v2483 = vrot.slane %v1574, %v2482
        %v2484 = vsel %vm2082, %v2483, %v2479
        %v2485 = vlaneseq
        %v2486 = vshrl.u32 %v2485, 7
        %v2487 = vsub.s32 %v2084, %v2486
        %v2488 = vrot.slane %v1575, %v2487
        %v2489 = vsel %vm2089, %v2488, %v2484
        %v2490 = vlaneseq
        %v2491 = vshrl.u32 %v2490, 7
        %v2492 = vsub.s32 %v2091, %v2491
        %v2493 = vrot.slane %v1576, %v2492
        %v2494 = vsel %vm2096, %v2493, %v2489
        %v2495 = vlaneseq
        %v2496 = vshrl.u32 %v2495, 7
        %v2497 = vsub.s32 %v2098, %v2496
        %v2498 = vrot.slane %v1577, %v2497
        %v2499 = vsel %vm2103, %v2498, %v2494
        %v2500 = vlaneseq
        %v2501 = vshrl.u32 %v2500, 7
        %v2502 = vsub.s32 %v1995, %v2501
        %v2503 = vrot.slane %v1578, %v2502
        %v2504 = vlaneseq
        %v2505 = vshrl.u32 %v2504, 7
        %v2506 = vsub.s32 %v2000, %v2505
        %v2507 = vrot.slane %v1579, %v2506
        %v2508 = vsel %vm2005, %v2507, %v2503
        %v2509 = vlaneseq
        %v2510 = vshrl.u32 %v2509, 7
        %v2511 = vsub.s32 %v2007, %v2510
        %v2512 = vrot.slane %v1580, %v2511
        %v2513 = vsel %vm2012, %v2512, %v2508
        %v2514 = vlaneseq
        %v2515 = vshrl.u32 %v2514, 7
        %v2516 = vsub.s32 %v2014, %v2515
        %v2517 = vrot.slane %v1581, %v2516
        %v2518 = vsel %vm2019, %v2517, %v2513
        %v2519 = vlaneseq
        %v2520 = vshrl.u32 %v2519, 7
        %v2521 = vsub.s32 %v2021, %v2520
        %v2522 = vrot.slane %v1582, %v2521
        %v2523 = vsel %vm2026, %v2522, %v2518
        %v2524 = vlaneseq
        %v2525 = vshrl.u32 %v2524, 7
        %v2526 = vsub.s32 %v2028, %v2525
        %v2527 = vrot.slane %v1583, %v2526
        %v2528 = vsel %vm2033, %v2527, %v2523
        %v2529 = vlaneseq
        %v2530 = vshrl.u32 %v2529, 7
        %v2531 = vsub.s32 %v2035, %v2530
        %v2532 = vrot.slane %v1584, %v2531
        %v2533 = vsel %vm2040, %v2532, %v2528
        %v2534 = vlaneseq
        %v2535 = vshrl.u32 %v2534, 7
        %v2536 = vsub.s32 %v2042, %v2535
        %v2537 = vrot.slane %v1585, %v2536
        %v2538 = vsel %vm2047, %v2537, %v2533
        %v2539 = vlaneseq
        %v2540 = vshrl.u32 %v2539, 7
        %v2541 = vsub.s32 %v2049, %v2540
        %v2542 = vrot.slane %v1586, %v2541
        %v2543 = vsel %vm2054, %v2542, %v2538
        %v2544 = vlaneseq
        %v2545 = vshrl.u32 %v2544, 7
        %v2546 = vsub.s32 %v2056, %v2545
        %v2547 = vrot.slane %v1587, %v2546
        %v2548 = vsel %vm2061, %v2547, %v2543
        %v2549 = vlaneseq
        %v2550 = vshrl.u32 %v2549, 7
        %v2551 = vsub.s32 %v2063, %v2550
        %v2552 = vrot.slane %v1588, %v2551
        %v2553 = vsel %vm2068, %v2552, %v2548
        %v2554 = vlaneseq
        %v2555 = vshrl.u32 %v2554, 7
        %v2556 = vsub.s32 %v2070, %v2555
        %v2557 = vrot.slane %v1589, %v2556
        %v2558 = vsel %vm2075, %v2557, %v2553
        %v2559 = vlaneseq
        %v2560 = vshrl.u32 %v2559, 7
        %v2561 = vsub.s32 %v2077, %v2560
        %v2562 = vrot.slane %v1590, %v2561
        %v2563 = vsel %vm2082, %v2562, %v2558
        %v2564 = vlaneseq
        %v2565 = vshrl.u32 %v2564, 7
        %v2566 = vsub.s32 %v2084, %v2565
        %v2567 = vrot.slane %v1591, %v2566
        %v2568 = vsel %vm2089, %v2567, %v2563
        %v2569 = vlaneseq
        %v2570 = vshrl.u32 %v2569, 7
        %v2571 = vsub.s32 %v2091, %v2570
        %v2572 = vrot.slane %v1592, %v2571
        %v2573 = vsel %vm2096, %v2572, %v2568
        %v2574 = vlaneseq
        %v2575 = vshrl.u32 %v2574, 7
        %v2576 = vsub.s32 %v2098, %v2575
        %v2577 = vrot.slane %v1593, %v2576
        %v2578 = vsel %vm2103, %v2577, %v2573
        %v2579 = vlaneseq
        %v2580 = vshrl.u32 %v2579, 7
        %v2581 = vsub.s32 %v1995, %v2580
        %v2582 = vrot.slane %v1594, %v2581
        %v2583 = vlaneseq
        %v2584 = vshrl.u32 %v2583, 7
        %v2585 = vsub.s32 %v2000, %v2584
        %v2586 = vrot.slane %v1595, %v2585
        %v2587 = vsel %vm2005, %v2586, %v2582
        %v2588 = vlaneseq
        %v2589 = vshrl.u32 %v2588, 7
        %v2590 = vsub.s32 %v2007, %v2589
        %v2591 = vrot.slane %v1596, %v2590
        %v2592 = vsel %vm2012, %v2591, %v2587
        %v2593 = vlaneseq
        %v2594 = vshrl.u32 %v2593, 7
        %v2595 = vsub.s32 %v2014, %v2594
        %v2596 = vrot.slane %v1597, %v2595
        %v2597 = vsel %vm2019, %v2596, %v2592
        %v2598 = vlaneseq
        %v2599 = vshrl.u32 %v2598, 7
        %v2600 = vsub.s32 %v2021, %v2599
        %v2601 = vrot.slane %v1598, %v2600
        %v2602 = vsel %vm2026, %v2601, %v2597
        %v2603 = vlaneseq
        %v2604 = vshrl.u32 %v2603, 7
        %v2605 = vsub.s32 %v2028, %v2604
        %v2606 = vrot.slane %v1599, %v2605
        %v2607 = vsel %vm2033, %v2606, %v2602
        %v2608 = vlaneseq
        %v2609 = vshrl.u32 %v2608, 7
        %v2610 = vsub.s32 %v2035, %v2609
        %v2611 = vrot.slane %v1600, %v2610
        %v2612 = vsel %vm2040, %v2611, %v2607
        %v2613 = vlaneseq
        %v2614 = vshrl.u32 %v2613, 7
        %v2615 = vsub.s32 %v2042, %v2614
        %v2616 = vrot.slane %v1601, %v2615
        %v2617 = vsel %vm2047, %v2616, %v2612
        %v2618 = vlaneseq
        %v2619 = vshrl.u32 %v2618, 7
        %v2620 = vsub.s32 %v2049, %v2619
        %v2621 = vrot.slane %v1602, %v2620
        %v2622 = vsel %vm2054, %v2621, %v2617
        %v2623 = vlaneseq
        %v2624 = vshrl.u32 %v2623, 7
        %v2625 = vsub.s32 %v2056, %v2624
        %v2626 = vrot.slane %v1603, %v2625
        %v2627 = vsel %vm2061, %v2626, %v2622
        %v2628 = vlaneseq
        %v2629 = vshrl.u32 %v2628, 7
        %v2630 = vsub.s32 %v2063, %v2629
        %v2631 = vrot.slane %v1604, %v2630
        %v2632 = vsel %vm2068, %v2631, %v2627
        %v2633 = vlaneseq
        %v2634 = vshrl.u32 %v2633, 7
        %v2635 = vsub.s32 %v2070, %v2634
        %v2636 = vrot.slane %v1605, %v2635
        %v2637 = vsel %vm2075, %v2636, %v2632
        %v2638 = vlaneseq
        %v2639 = vshrl.u32 %v2638, 7
        %v2640 = vsub.s32 %v2077, %v2639
        %v2641 = vrot.slane %v1606, %v2640
        %v2642 = vsel %vm2082, %v2641, %v2637
        %v2643 = vlaneseq
        %v2644 = vshrl.u32 %v2643, 7
        %v2645 = vsub.s32 %v2084, %v2644
        %v2646 = vrot.slane %v1607, %v2645
        %v2647 = vsel %vm2089, %v2646, %v2642
        %v2648 = vlaneseq
        %v2649 = vshrl.u32 %v2648, 7
        %v2650 = vsub.s32 %v2091, %v2649
        %v2651 = vrot.slane %v1608, %v2650
        %v2652 = vsel %vm2096, %v2651, %v2647
        %v2653 = vlaneseq
        %v2654 = vshrl.u32 %v2653, 7
        %v2655 = vsub.s32 %v2098, %v2654
        %v2656 = vrot.slane %v1609, %v2655
        %v2657 = vsel %vm2103, %v2656, %v2652
        %v2658 = vlaneseq
        %v2659 = vshrl.u32 %v2658, 7
        %v2660 = vsub.s32 %v1995, %v2659
        %v2661 = vrot.slane %v1610, %v2660
        %v2662 = vlaneseq
        %v2663 = vshrl.u32 %v2662, 7
        %v2664 = vsub.s32 %v2000, %v2663
        %v2665 = vrot.slane %v1611, %v2664
        %v2666 = vsel %vm2005, %v2665, %v2661
        %v2667 = vlaneseq
        %v2668 = vshrl.u32 %v2667, 7
        %v2669 = vsub.s32 %v2007, %v2668
        %v2670 = vrot.slane %v1612, %v2669
        %v2671 = vsel %vm2012, %v2670, %v2666
        %v2672 = vlaneseq
        %v2673 = vshrl.u32 %v2672, 7
        %v2674 = vsub.s32 %v2014, %v2673
        %v2675 = vrot.slane %v1613, %v2674
        %v2676 = vsel %vm2019, %v2675, %v2671
        %v2677 = vlaneseq
        %v2678 = vshrl.u32 %v2677, 7
        %v2679 = vsub.s32 %v2021, %v2678
        %v2680 = vrot.slane %v1614, %v2679
        %v2681 = vsel %vm2026, %v2680, %v2676
        %v2682 = vlaneseq
        %v2683 = vshrl.u32 %v2682, 7
        %v2684 = vsub.s32 %v2028, %v2683
        %v2685 = vrot.slane %v1615, %v2684
        %v2686 = vsel %vm2033, %v2685, %v2681
        %v2687 = vlaneseq
        %v2688 = vshrl.u32 %v2687, 7
        %v2689 = vsub.s32 %v2035, %v2688
        %v2690 = vrot.slane %v1616, %v2689
        %v2691 = vsel %vm2040, %v2690, %v2686
        %v2692 = vlaneseq
        %v2693 = vshrl.u32 %v2692, 7
        %v2694 = vsub.s32 %v2042, %v2693
        %v2695 = vrot.slane %v1617, %v2694
        %v2696 = vsel %vm2047, %v2695, %v2691
        %v2697 = vlaneseq
        %v2698 = vshrl.u32 %v2697, 7
        %v2699 = vsub.s32 %v2049, %v2698
        %v2700 = vrot.slane %v1618, %v2699
        %v2701 = vsel %vm2054, %v2700, %v2696
        %v2702 = vlaneseq
        %v2703 = vshrl.u32 %v2702, 7
        %v2704 = vsub.s32 %v2056, %v2703
        %v2705 = vrot.slane %v1619, %v2704
        %v2706 = vsel %vm2061, %v2705, %v2701
        %v2707 = vlaneseq
        %v2708 = vshrl.u32 %v2707, 7
        %v2709 = vsub.s32 %v2063, %v2708
        %v2710 = vrot.slane %v1620, %v2709
        %v2711 = vsel %vm2068, %v2710, %v2706
        %v2712 = vlaneseq
        %v2713 = vshrl.u32 %v2712, 7
        %v2714 = vsub.s32 %v2070, %v2713
        %v2715 = vrot.slane %v1621, %v2714
        %v2716 = vsel %vm2075, %v2715, %v2711
        %v2717 = vlaneseq
        %v2718 = vshrl.u32 %v2717, 7
        %v2719 = vsub.s32 %v2077, %v2718
        %v2720 = vrot.slane %v1622, %v2719
        %v2721 = vsel %vm2082, %v2720, %v2716
        %v2722 = vlaneseq
        %v2723 = vshrl.u32 %v2722, 7
        %v2724 = vsub.s32 %v2084, %v2723
        %v2725 = vrot.slane %v1623, %v2724
        %v2726 = vsel %vm2089, %v2725, %v2721
        %v2727 = vlaneseq
        %v2728 = vshrl.u32 %v2727, 7
        %v2729 = vsub.s32 %v2091, %v2728
        %v2730 = vrot.slane %v1624, %v2729
        %v2731 = vsel %vm2096, %v2730, %v2726
        %v2732 = vlaneseq
        %v2733 = vshrl.u32 %v2732, 7
        %v2734 = vsub.s32 %v2098, %v2733
        %v2735 = vrot.slane %v1625, %v2734
        %v2736 = vsel %vm2103, %v2735, %v2731
        %v2737 = vlaneseq
        %v2738 = vshrl.u32 %v2737, 7
        %v2739 = vsub.s32 %v1995, %v2738
        %v2740 = vrot.slane %v1626, %v2739
        %v2741 = vlaneseq
        %v2742 = vshrl.u32 %v2741, 7
        %v2743 = vsub.s32 %v2000, %v2742
        %v2744 = vrot.slane %v1627, %v2743
        %v2745 = vsel %vm2005, %v2744, %v2740
        %v2746 = vlaneseq
        %v2747 = vshrl.u32 %v2746, 7
        %v2748 = vsub.s32 %v2007, %v2747
        %v2749 = vrot.slane %v1628, %v2748
        %v2750 = vsel %vm2012, %v2749, %v2745
        %v2751 = vlaneseq
        %v2752 = vshrl.u32 %v2751, 7
        %v2753 = vsub.s32 %v2014, %v2752
        %v2754 = vrot.slane %v1629, %v2753
        %v2755 = vsel %vm2019, %v2754, %v2750
        %v2756 = vlaneseq
        %v2757 = vshrl.u32 %v2756, 7
        %v2758 = vsub.s32 %v2021, %v2757
        %v2759 = vrot.slane %v1630, %v2758
        %v2760 = vsel %vm2026, %v2759, %v2755
        %v2761 = vlaneseq
        %v2762 = vshrl.u32 %v2761, 7
        %v2763 = vsub.s32 %v2028, %v2762
        %v2764 = vrot.slane %v1631, %v2763
        %v2765 = vsel %vm2033, %v2764, %v2760
        %v2766 = vlaneseq
        %v2767 = vshrl.u32 %v2766, 7
        %v2768 = vsub.s32 %v2035, %v2767
        %v2769 = vrot.slane %v1632, %v2768
        %v2770 = vsel %vm2040, %v2769, %v2765
        %v2771 = vlaneseq
        %v2772 = vshrl.u32 %v2771, 7
        %v2773 = vsub.s32 %v2042, %v2772
        %v2774 = vrot.slane %v1633, %v2773
        %v2775 = vsel %vm2047, %v2774, %v2770
        %v2776 = vlaneseq
        %v2777 = vshrl.u32 %v2776, 7
        %v2778 = vsub.s32 %v2049, %v2777
        %v2779 = vrot.slane %v1634, %v2778
        %v2780 = vsel %vm2054, %v2779, %v2775
        %v2781 = vlaneseq
        %v2782 = vshrl.u32 %v2781, 7
        %v2783 = vsub.s32 %v2056, %v2782
        %v2784 = vrot.slane %v1635, %v2783
        %v2785 = vsel %vm2061, %v2784, %v2780
        %v2786 = vlaneseq
        %v2787 = vshrl.u32 %v2786, 7
        %v2788 = vsub.s32 %v2063, %v2787
        %v2789 = vrot.slane %v1636, %v2788
        %v2790 = vsel %vm2068, %v2789, %v2785
        %v2791 = vlaneseq
        %v2792 = vshrl.u32 %v2791, 7
        %v2793 = vsub.s32 %v2070, %v2792
        %v2794 = vrot.slane %v1637, %v2793
        %v2795 = vsel %vm2075, %v2794, %v2790
        %v2796 = vlaneseq
        %v2797 = vshrl.u32 %v2796, 7
        %v2798 = vsub.s32 %v2077, %v2797
        %v2799 = vrot.slane %v1638, %v2798
        %v2800 = vsel %vm2082, %v2799, %v2795
        %v2801 = vlaneseq
        %v2802 = vshrl.u32 %v2801, 7
        %v2803 = vsub.s32 %v2084, %v2802
        %v2804 = vrot.slane %v1639, %v2803
        %v2805 = vsel %vm2089, %v2804, %v2800
        %v2806 = vlaneseq
        %v2807 = vshrl.u32 %v2806, 7
        %v2808 = vsub.s32 %v2091, %v2807
        %v2809 = vrot.slane %v1640, %v2808
        %v2810 = vsel %vm2096, %v2809, %v2805
        %v2811 = vlaneseq
        %v2812 = vshrl.u32 %v2811, 7
        %v2813 = vsub.s32 %v2098, %v2812
        %v2814 = vrot.slane %v1641, %v2813
        %v2815 = vsel %vm2103, %v2814, %v2810
        %v2816 = vlaneseq
        %v2817 = vshrl.u32 %v2816, 7
        %v2818 = vsub.s32 %v1995, %v2817
        %v2819 = vrot.slane %v1642, %v2818
        %v2820 = vlaneseq
        %v2821 = vshrl.u32 %v2820, 7
        %v2822 = vsub.s32 %v2000, %v2821
        %v2823 = vrot.slane %v1643, %v2822
        %v2824 = vsel %vm2005, %v2823, %v2819
        %v2825 = vlaneseq
        %v2826 = vshrl.u32 %v2825, 7
        %v2827 = vsub.s32 %v2007, %v2826
        %v2828 = vrot.slane %v1644, %v2827
        %v2829 = vsel %vm2012, %v2828, %v2824
        %v2830 = vlaneseq
        %v2831 = vshrl.u32 %v2830, 7
        %v2832 = vsub.s32 %v2014, %v2831
        %v2833 = vrot.slane %v1645, %v2832
        %v2834 = vsel %vm2019, %v2833, %v2829
        %v2835 = vlaneseq
        %v2836 = vshrl.u32 %v2835, 7
        %v2837 = vsub.s32 %v2021, %v2836
        %v2838 = vrot.slane %v1646, %v2837
        %v2839 = vsel %vm2026, %v2838, %v2834
        %v2840 = vlaneseq
        %v2841 = vshrl.u32 %v2840, 7
        %v2842 = vsub.s32 %v2028, %v2841
        %v2843 = vrot.slane %v1647, %v2842
        %v2844 = vsel %vm2033, %v2843, %v2839
        %v2845 = vlaneseq
        %v2846 = vshrl.u32 %v2845, 7
        %v2847 = vsub.s32 %v2035, %v2846
        %v2848 = vrot.slane %v1648, %v2847
        %v2849 = vsel %vm2040, %v2848, %v2844
        %v2850 = vlaneseq
        %v2851 = vshrl.u32 %v2850, 7
        %v2852 = vsub.s32 %v2042, %v2851
        %v2853 = vrot.slane %v1649, %v2852
        %v2854 = vsel %vm2047, %v2853, %v2849
        %v2855 = vlaneseq
        %v2856 = vshrl.u32 %v2855, 7
        %v2857 = vsub.s32 %v2049, %v2856
        %v2858 = vrot.slane %v1650, %v2857
        %v2859 = vsel %vm2054, %v2858, %v2854
        %v2860 = vlaneseq
        %v2861 = vshrl.u32 %v2860, 7
        %v2862 = vsub.s32 %v2056, %v2861
        %v2863 = vrot.slane %v1651, %v2862
        %v2864 = vsel %vm2061, %v2863, %v2859
        %v2865 = vlaneseq
        %v2866 = vshrl.u32 %v2865, 7
        %v2867 = vsub.s32 %v2063, %v2866
        %v2868 = vrot.slane %v1652, %v2867
        %v2869 = vsel %vm2068, %v2868, %v2864
        %v2870 = vlaneseq
        %v2871 = vshrl.u32 %v2870, 7
        %v2872 = vsub.s32 %v2070, %v2871
        %v2873 = vrot.slane %v1653, %v2872
        %v2874 = vsel %vm2075, %v2873, %v2869
        %v2875 = vlaneseq
        %v2876 = vshrl.u32 %v2875, 7
        %v2877 = vsub.s32 %v2077, %v2876
        %v2878 = vrot.slane %v1654, %v2877
        %v2879 = vsel %vm2082, %v2878, %v2874
        %v2880 = vlaneseq
        %v2881 = vshrl.u32 %v2880, 7
        %v2882 = vsub.s32 %v2084, %v2881
        %v2883 = vrot.slane %v1655, %v2882
        %v2884 = vsel %vm2089, %v2883, %v2879
        %v2885 = vlaneseq
        %v2886 = vshrl.u32 %v2885, 7
        %v2887 = vsub.s32 %v2091, %v2886
        %v2888 = vrot.slane %v1656, %v2887
        %v2889 = vsel %vm2096, %v2888, %v2884
        %v2890 = vlaneseq
        %v2891 = vshrl.u32 %v2890, 7
        %v2892 = vsub.s32 %v2098, %v2891
        %v2893 = vrot.slane %v1657, %v2892
        %v2894 = vsel %vm2103, %v2893, %v2889
        %v2895 = vlaneseq
        %v2896 = vshrl.u32 %v2895, 7
        %v2897 = vsub.s32 %v1995, %v2896
        %v2898 = vrot.slane %v1658, %v2897
        %v2899 = vlaneseq
        %v2900 = vshrl.u32 %v2899, 7
        %v2901 = vsub.s32 %v2000, %v2900
        %v2902 = vrot.slane %v1659, %v2901
        %v2903 = vsel %vm2005, %v2902, %v2898
        %v2904 = vlaneseq
        %v2905 = vshrl.u32 %v2904, 7
        %v2906 = vsub.s32 %v2007, %v2905
        %v2907 = vrot.slane %v1660, %v2906
        %v2908 = vsel %vm2012, %v2907, %v2903
        %v2909 = vlaneseq
        %v2910 = vshrl.u32 %v2909, 7
        %v2911 = vsub.s32 %v2014, %v2910
        %v2912 = vrot.slane %v1661, %v2911
        %v2913 = vsel %vm2019, %v2912, %v2908
        %v2914 = vlaneseq
        %v2915 = vshrl.u32 %v2914, 7
        %v2916 = vsub.s32 %v2021, %v2915
        %v2917 = vrot.slane %v1662, %v2916
        %v2918 = vsel %vm2026, %v2917, %v2913
        %v2919 = vlaneseq
        %v2920 = vshrl.u32 %v2919, 7
        %v2921 = vsub.s32 %v2028, %v2920
        %v2922 = vrot.slane %v1663, %v2921
        %v2923 = vsel %vm2033, %v2922, %v2918
        %v2924 = vlaneseq
        %v2925 = vshrl.u32 %v2924, 7
        %v2926 = vsub.s32 %v2035, %v2925
        %v2927 = vrot.slane %v1664, %v2926
        %v2928 = vsel %vm2040, %v2927, %v2923
        %v2929 = vlaneseq
        %v2930 = vshrl.u32 %v2929, 7
        %v2931 = vsub.s32 %v2042, %v2930
        %v2932 = vrot.slane %v1665, %v2931
        %v2933 = vsel %vm2047, %v2932, %v2928
        %v2934 = vlaneseq
        %v2935 = vshrl.u32 %v2934, 7
        %v2936 = vsub.s32 %v2049, %v2935
        %v2937 = vrot.slane %v1666, %v2936
        %v2938 = vsel %vm2054, %v2937, %v2933
        %v2939 = vlaneseq
        %v2940 = vshrl.u32 %v2939, 7
        %v2941 = vsub.s32 %v2056, %v2940
        %v2942 = vrot.slane %v1667, %v2941
        %v2943 = vsel %vm2061, %v2942, %v2938
        %v2944 = vlaneseq
        %v2945 = vshrl.u32 %v2944, 7
        %v2946 = vsub.s32 %v2063, %v2945
        %v2947 = vrot.slane %v1668, %v2946
        %v2948 = vsel %vm2068, %v2947, %v2943
        %v2949 = vlaneseq
        %v2950 = vshrl.u32 %v2949, 7
        %v2951 = vsub.s32 %v2070, %v2950
        %v2952 = vrot.slane %v1669, %v2951
        %v2953 = vsel %vm2075, %v2952, %v2948
        %v2954 = vlaneseq
        %v2955 = vshrl.u32 %v2954, 7
        %v2956 = vsub.s32 %v2077, %v2955
        %v2957 = vrot.slane %v1670, %v2956
        %v2958 = vsel %vm2082, %v2957, %v2953
        %v2959 = vlaneseq
        %v2960 = vshrl.u32 %v2959, 7
        %v2961 = vsub.s32 %v2084, %v2960
        %v2962 = vrot.slane %v1671, %v2961
        %v2963 = vsel %vm2089, %v2962, %v2958
        %v2964 = vlaneseq
        %v2965 = vshrl.u32 %v2964, 7
        %v2966 = vsub.s32 %v2091, %v2965
        %v2967 = vrot.slane %v1672, %v2966
        %v2968 = vsel %vm2096, %v2967, %v2963
        %v2969 = vlaneseq
        %v2970 = vshrl.u32 %v2969, 7
        %v2971 = vsub.s32 %v2098, %v2970
        %v2972 = vrot.slane %v1673, %v2971
        %v2973 = vsel %vm2103, %v2972, %v2968
        %v2974 = vlaneseq
        %v2975 = vshrl.u32 %v2974, 7
        %v2976 = vsub.s32 %v1995, %v2975
        %v2977 = vrot.slane %v1674, %v2976
        %v2978 = vlaneseq
        %v2979 = vshrl.u32 %v2978, 7
        %v2980 = vsub.s32 %v2000, %v2979
        %v2981 = vrot.slane %v1675, %v2980
        %v2982 = vsel %vm2005, %v2981, %v2977
        %v2983 = vlaneseq
        %v2984 = vshrl.u32 %v2983, 7
        %v2985 = vsub.s32 %v2007, %v2984
        %v2986 = vrot.slane %v1676, %v2985
        %v2987 = vsel %vm2012, %v2986, %v2982
        %v2988 = vlaneseq
        %v2989 = vshrl.u32 %v2988, 7
        %v2990 = vsub.s32 %v2014, %v2989
        %v2991 = vrot.slane %v1677, %v2990
        %v2992 = vsel %vm2019, %v2991, %v2987
        %v2993 = vlaneseq
        %v2994 = vshrl.u32 %v2993, 7
        %v2995 = vsub.s32 %v2021, %v2994
        %v2996 = vrot.slane %v1678, %v2995
        %v2997 = vsel %vm2026, %v2996, %v2992
        %v2998 = vlaneseq
        %v2999 = vshrl.u32 %v2998, 7
        %v3000 = vsub.s32 %v2028, %v2999
        %v3001 = vrot.slane %v1679, %v3000
        %v3002 = vsel %vm2033, %v3001, %v2997
        %v3003 = vlaneseq
        %v3004 = vshrl.u32 %v3003, 7
        %v3005 = vsub.s32 %v2035, %v3004
        %v3006 = vrot.slane %v1680, %v3005
        %v3007 = vsel %vm2040, %v3006, %v3002
        %v3008 = vlaneseq
        %v3009 = vshrl.u32 %v3008, 7
        %v3010 = vsub.s32 %v2042, %v3009
        %v3011 = vrot.slane %v1681, %v3010
        %v3012 = vsel %vm2047, %v3011, %v3007
        %v3013 = vlaneseq
        %v3014 = vshrl.u32 %v3013, 7
        %v3015 = vsub.s32 %v2049, %v3014
        %v3016 = vrot.slane %v1682, %v3015
        %v3017 = vsel %vm2054, %v3016, %v3012
        %v3018 = vlaneseq
        %v3019 = vshrl.u32 %v3018, 7
        %v3020 = vsub.s32 %v2056, %v3019
        %v3021 = vrot.slane %v1683, %v3020
        %v3022 = vsel %vm2061, %v3021, %v3017
        %v3023 = vlaneseq
        %v3024 = vshrl.u32 %v3023, 7
        %v3025 = vsub.s32 %v2063, %v3024
        %v3026 = vrot.slane %v1684, %v3025
        %v3027 = vsel %vm2068, %v3026, %v3022
        %v3028 = vlaneseq
        %v3029 = vshrl.u32 %v3028, 7
        %v3030 = vsub.s32 %v2070, %v3029
        %v3031 = vrot.slane %v1685, %v3030
        %v3032 = vsel %vm2075, %v3031, %v3027
        %v3033 = vlaneseq
        %v3034 = vshrl.u32 %v3033, 7
        %v3035 = vsub.s32 %v2077, %v3034
        %v3036 = vrot.slane %v1686, %v3035
        %v3037 = vsel %vm2082, %v3036, %v3032
        %v3038 = vlaneseq
        %v3039 = vshrl.u32 %v3038, 7
        %v3040 = vsub.s32 %v2084, %v3039
        %v3041 = vrot.slane %v1687, %v3040
        %v3042 = vsel %vm2089, %v3041, %v3037
        %v3043 = vlaneseq
        %v3044 = vshrl.u32 %v3043, 7
        %v3045 = vsub.s32 %v2091, %v3044
        %v3046 = vrot.slane %v1688, %v3045
        %v3047 = vsel %vm2096, %v3046, %v3042
        %v3048 = vlaneseq
        %v3049 = vshrl.u32 %v3048, 7
        %v3050 = vsub.s32 %v2098, %v3049
        %v3051 = vrot.slane %v1689, %v3050
        %v3052 = vsel %vm2103, %v3051, %v3047
        %v3053 = vlaneseq
        %v3054 = vshrl.u32 %v3053, 7
        %v3055 = vsub.s32 %v1995, %v3054
        %v3056 = vrot.slane %v1690, %v3055
        %v3057 = vlaneseq
        %v3058 = vshrl.u32 %v3057, 7
        %v3059 = vsub.s32 %v2000, %v3058
        %v3060 = vrot.slane %v1691, %v3059
        %v3061 = vsel %vm2005, %v3060, %v3056
        %v3062 = vlaneseq
        %v3063 = vshrl.u32 %v3062, 7
        %v3064 = vsub.s32 %v2007, %v3063
        %v3065 = vrot.slane %v1692, %v3064
        %v3066 = vsel %vm2012, %v3065, %v3061
        %v3067 = vlaneseq
        %v3068 = vshrl.u32 %v3067, 7
        %v3069 = vsub.s32 %v2014, %v3068
        %v3070 = vrot.slane %v1693, %v3069
        %v3071 = vsel %vm2019, %v3070, %v3066
        %v3072 = vlaneseq
        %v3073 = vshrl.u32 %v3072, 7
        %v3074 = vsub.s32 %v2021, %v3073
        %v3075 = vrot.slane %v1694, %v3074
        %v3076 = vsel %vm2026, %v3075, %v3071
        %v3077 = vlaneseq
        %v3078 = vshrl.u32 %v3077, 7
        %v3079 = vsub.s32 %v2028, %v3078
        %v3080 = vrot.slane %v1695, %v3079
        %v3081 = vsel %vm2033, %v3080, %v3076
        %v3082 = vlaneseq
        %v3083 = vshrl.u32 %v3082, 7
        %v3084 = vsub.s32 %v2035, %v3083
        %v3085 = vrot.slane %v1696, %v3084
        %v3086 = vsel %vm2040, %v3085, %v3081
        %v3087 = vlaneseq
        %v3088 = vshrl.u32 %v3087, 7
        %v3089 = vsub.s32 %v2042, %v3088
        %v3090 = vrot.slane %v1697, %v3089
        %v3091 = vsel %vm2047, %v3090, %v3086
        %v3092 = vlaneseq
        %v3093 = vshrl.u32 %v3092, 7
        %v3094 = vsub.s32 %v2049, %v3093
        %v3095 = vrot.slane %v1698, %v3094
        %v3096 = vsel %vm2054, %v3095, %v3091
        %v3097 = vlaneseq
        %v3098 = vshrl.u32 %v3097, 7
        %v3099 = vsub.s32 %v2056, %v3098
        %v3100 = vrot.slane %v1699, %v3099
        %v3101 = vsel %vm2061, %v3100, %v3096
        %v3102 = vlaneseq
        %v3103 = vshrl.u32 %v3102, 7
        %v3104 = vsub.s32 %v2063, %v3103
        %v3105 = vrot.slane %v1700, %v3104
        %v3106 = vsel %vm2068, %v3105, %v3101
        %v3107 = vlaneseq
        %v3108 = vshrl.u32 %v3107, 7
        %v3109 = vsub.s32 %v2070, %v3108
        %v3110 = vrot.slane %v1701, %v3109
        %v3111 = vsel %vm2075, %v3110, %v3106
        %v3112 = vlaneseq
        %v3113 = vshrl.u32 %v3112, 7
        %v3114 = vsub.s32 %v2077, %v3113
        %v3115 = vrot.slane %v1702, %v3114
        %v3116 = vsel %vm2082, %v3115, %v3111
        %v3117 = vlaneseq
        %v3118 = vshrl.u32 %v3117, 7
        %v3119 = vsub.s32 %v2084, %v3118
        %v3120 = vrot.slane %v1703, %v3119
        %v3121 = vsel %vm2089, %v3120, %v3116
        %v3122 = vlaneseq
        %v3123 = vshrl.u32 %v3122, 7
        %v3124 = vsub.s32 %v2091, %v3123
        %v3125 = vrot.slane %v1704, %v3124
        %v3126 = vsel %vm2096, %v3125, %v3121
        %v3127 = vlaneseq
        %v3128 = vshrl.u32 %v3127, 7
        %v3129 = vsub.s32 %v2098, %v3128
        %v3130 = vrot.slane %v1705, %v3129
        %v3131 = vsel %vm2103, %v3130, %v3126
        %v3132 = vlaneseq
        %v3133 = vshrl.u32 %v3132, 7
        %v3134 = vsub.s32 %v1995, %v3133
        %v3135 = vrot.slane %v1706, %v3134
        %v3136 = vlaneseq
        %v3137 = vshrl.u32 %v3136, 7
        %v3138 = vsub.s32 %v2000, %v3137
        %v3139 = vrot.slane %v1707, %v3138
        %v3140 = vsel %vm2005, %v3139, %v3135
        %v3141 = vlaneseq
        %v3142 = vshrl.u32 %v3141, 7
        %v3143 = vsub.s32 %v2007, %v3142
        %v3144 = vrot.slane %v1708, %v3143
        %v3145 = vsel %vm2012, %v3144, %v3140
        %v3146 = vlaneseq
        %v3147 = vshrl.u32 %v3146, 7
        %v3148 = vsub.s32 %v2014, %v3147
        %v3149 = vrot.slane %v1709, %v3148
        %v3150 = vsel %vm2019, %v3149, %v3145
        %v3151 = vlaneseq
        %v3152 = vshrl.u32 %v3151, 7
        %v3153 = vsub.s32 %v2021, %v3152
        %v3154 = vrot.slane %v1710, %v3153
        %v3155 = vsel %vm2026, %v3154, %v3150
        %v3156 = vlaneseq
        %v3157 = vshrl.u32 %v3156, 7
        %v3158 = vsub.s32 %v2028, %v3157
        %v3159 = vrot.slane %v1711, %v3158
        %v3160 = vsel %vm2033, %v3159, %v3155
        %v3161 = vlaneseq
        %v3162 = vshrl.u32 %v3161, 7
        %v3163 = vsub.s32 %v2035, %v3162
        %v3164 = vrot.slane %v1712, %v3163
        %v3165 = vsel %vm2040, %v3164, %v3160
        %v3166 = vlaneseq
        %v3167 = vshrl.u32 %v3166, 7
        %v3168 = vsub.s32 %v2042, %v3167
        %v3169 = vrot.slane %v1713, %v3168
        %v3170 = vsel %vm2047, %v3169, %v3165
        %v3171 = vlaneseq
        %v3172 = vshrl.u32 %v3171, 7
        %v3173 = vsub.s32 %v2049, %v3172
        %v3174 = vrot.slane %v1714, %v3173
        %v3175 = vsel %vm2054, %v3174, %v3170
        %v3176 = vlaneseq
        %v3177 = vshrl.u32 %v3176, 7
        %v3178 = vsub.s32 %v2056, %v3177
        %v3179 = vrot.slane %v1715, %v3178
        %v3180 = vsel %vm2061, %v3179, %v3175
        %v3181 = vlaneseq
        %v3182 = vshrl.u32 %v3181, 7
        %v3183 = vsub.s32 %v2063, %v3182
        %v3184 = vrot.slane %v1716, %v3183
        %v3185 = vsel %vm2068, %v3184, %v3180
        %v3186 = vlaneseq
        %v3187 = vshrl.u32 %v3186, 7
        %v3188 = vsub.s32 %v2070, %v3187
        %v3189 = vrot.slane %v1717, %v3188
        %v3190 = vsel %vm2075, %v3189, %v3185
        %v3191 = vlaneseq
        %v3192 = vshrl.u32 %v3191, 7
        %v3193 = vsub.s32 %v2077, %v3192
        %v3194 = vrot.slane %v1718, %v3193
        %v3195 = vsel %vm2082, %v3194, %v3190
        %v3196 = vlaneseq
        %v3197 = vshrl.u32 %v3196, 7
        %v3198 = vsub.s32 %v2084, %v3197
        %v3199 = vrot.slane %v1719, %v3198
        %v3200 = vsel %vm2089, %v3199, %v3195
        %v3201 = vlaneseq
        %v3202 = vshrl.u32 %v3201, 7
        %v3203 = vsub.s32 %v2091, %v3202
        %v3204 = vrot.slane %v1720, %v3203
        %v3205 = vsel %vm2096, %v3204, %v3200
        %v3206 = vlaneseq
        %v3207 = vshrl.u32 %v3206, 7
        %v3208 = vsub.s32 %v2098, %v3207
        %v3209 = vrot.slane %v1721, %v3208
        %v3210 = vsel %vm2103, %v3209, %v3205
        %v3211 = vlaneseq
        %v3212 = vshrl.u32 %v3211, 7
        %v3213 = vsub.s32 %v1995, %v3212
        %v3214 = vrot.slane %v1722, %v3213
        %v3215 = vlaneseq
        %v3216 = vshrl.u32 %v3215, 7
        %v3217 = vsub.s32 %v2000, %v3216
        %v3218 = vrot.slane %v1723, %v3217
        %v3219 = vsel %vm2005, %v3218, %v3214
        %v3220 = vlaneseq
        %v3221 = vshrl.u32 %v3220, 7
        %v3222 = vsub.s32 %v2007, %v3221
        %v3223 = vrot.slane %v1724, %v3222
        %v3224 = vsel %vm2012, %v3223, %v3219
        %v3225 = vlaneseq
        %v3226 = vshrl.u32 %v3225, 7
        %v3227 = vsub.s32 %v2014, %v3226
        %v3228 = vrot.slane %v1725, %v3227
        %v3229 = vsel %vm2019, %v3228, %v3224
        %v3230 = vlaneseq
        %v3231 = vshrl.u32 %v3230, 7
        %v3232 = vsub.s32 %v2021, %v3231
        %v3233 = vrot.slane %v1726, %v3232
        %v3234 = vsel %vm2026, %v3233, %v3229
        %v3235 = vlaneseq
        %v3236 = vshrl.u32 %v3235, 7
        %v3237 = vsub.s32 %v2028, %v3236
        %v3238 = vrot.slane %v1727, %v3237
        %v3239 = vsel %vm2033, %v3238, %v3234
        %v3240 = vlaneseq
        %v3241 = vshrl.u32 %v3240, 7
        %v3242 = vsub.s32 %v2035, %v3241
        %v3243 = vrot.slane %v1728, %v3242
        %v3244 = vsel %vm2040, %v3243, %v3239
        %v3245 = vlaneseq
        %v3246 = vshrl.u32 %v3245, 7
        %v3247 = vsub.s32 %v2042, %v3246
        %v3248 = vrot.slane %v1729, %v3247
        %v3249 = vsel %vm2047, %v3248, %v3244
        %v3250 = vlaneseq
        %v3251 = vshrl.u32 %v3250, 7
        %v3252 = vsub.s32 %v2049, %v3251
        %v3253 = vrot.slane %v1730, %v3252
        %v3254 = vsel %vm2054, %v3253, %v3249
        %v3255 = vlaneseq
        %v3256 = vshrl.u32 %v3255, 7
        %v3257 = vsub.s32 %v2056, %v3256
        %v3258 = vrot.slane %v1731, %v3257
        %v3259 = vsel %vm2061, %v3258, %v3254
        %v3260 = vlaneseq
        %v3261 = vshrl.u32 %v3260, 7
        %v3262 = vsub.s32 %v2063, %v3261
        %v3263 = vrot.slane %v1732, %v3262
        %v3264 = vsel %vm2068, %v3263, %v3259
        %v3265 = vlaneseq
        %v3266 = vshrl.u32 %v3265, 7
        %v3267 = vsub.s32 %v2070, %v3266
        %v3268 = vrot.slane %v1733, %v3267
        %v3269 = vsel %vm2075, %v3268, %v3264
        %v3270 = vlaneseq
        %v3271 = vshrl.u32 %v3270, 7
        %v3272 = vsub.s32 %v2077, %v3271
        %v3273 = vrot.slane %v1734, %v3272
        %v3274 = vsel %vm2082, %v3273, %v3269
        %v3275 = vlaneseq
        %v3276 = vshrl.u32 %v3275, 7
        %v3277 = vsub.s32 %v2084, %v3276
        %v3278 = vrot.slane %v1735, %v3277
        %v3279 = vsel %vm2089, %v3278, %v3274
        %v3280 = vlaneseq
        %v3281 = vshrl.u32 %v3280, 7
        %v3282 = vsub.s32 %v2091, %v3281
        %v3283 = vrot.slane %v1736, %v3282
        %v3284 = vsel %vm2096, %v3283, %v3279
        %v3285 = vlaneseq
        %v3286 = vshrl.u32 %v3285, 7
        %v3287 = vsub.s32 %v2098, %v3286
        %v3288 = vrot.slane %v1737, %v3287
        %v3289 = vsel %vm2103, %v3288, %v3284
        %vm3290 = vcmask 1041409
        %v3291 = vsel %vm3290, %v2183, %v2104
        %vm3292 = vcmask 1042434
        %v3293 = vsel %vm3292, %v2262, %v3291
        %vm3294 = vcmask 1043459
        %v3295 = vsel %vm3294, %v2341, %v3293
        %vm3296 = vcmask 1044484
        %v3297 = vsel %vm3296, %v2420, %v3295
        %vm3298 = vcmask 1045509
        %v3299 = vsel %vm3298, %v2499, %v3297
        %vm3300 = vcmask 1046534
        %v3301 = vsel %vm3300, %v2578, %v3299
        %vm3302 = vcmask 1047559
        %v3303 = vsel %vm3302, %v2657, %v3301
        %v3304 = vsel %vm3290, %v2815, %v2736
        %v3305 = vsel %vm3292, %v2894, %v3304
        %v3306 = vsel %vm3294, %v2973, %v3305
        %v3307 = vsel %vm3296, %v3052, %v3306
        %v3308 = vsel %vm3298, %v3131, %v3307
        %v3309 = vsel %vm3300, %v3210, %v3308
        %v3310 = vsel %vm3302, %v3289, %v3309
        %3313 = vst [vmem:[%s177] sm:$0xff] %v3303
        %3314 = vst [vmem:[%s177 + $0x8] sm:$0xff] %v3310
        %s3315 = sand.u32 %s94, 1
        %s3316 = scalar_lea.sflag [#allocation4], %s3315
        %s3317 = sand.u32 %s94, 1
        %s3318 = smul.addr %s3317, 16
        %s3319 = scalar_lea.vmem [#allocation3], %s3318
        // Predicated region
        $region33: #{tpu_custom_call.1} parent=31 // pred_check
          %p3320 = pneg %p104
        $region34: #{tpu_custom_call.1} parent=31 // pred_check_branch
          %3322 = sbr.rel (%p3320) target = $region36
        $region35: #{tpu_custom_call.1} parent=31 // pred_region
          %s3324 = ssub.s32 256, 256
          %3325 = vsyncadd %s3316, %s3324
          %s3326 = smul.addr %s18, 2
          %s3327 = smul.addr %s3326, 128
          %s3328 = scalar_lea.hbm %s3, %s3327
          %s3329 = sshll.u32 %s3319, 4
          %s3330 = int_to_ptr.vmem [resolvable:$true] %s3329
          %3335 = dma.vmem_to_hbm [thread:$0]  %s3330, 256, %s3328, %s3316, 128, 128, 8
        $region36: #{tpu_custom_call.1} parent=31 // pred_fallthru
          _
      $region32: #{tpu_custom_call.1} parent=5 // pred_fallthru
        _
      %p3336 = scmp.le.s32.totalorder 2, %s13
      // Predicated region
      $region37: #{tpu_custom_call.1} parent=5 // pred_check
        %p3337 = pneg %p3336
      $region38: #{tpu_custom_call.1} parent=5 // pred_check_branch
        %3339 = sbr.rel (%p3337) target = $region40
      $region39: #{tpu_custom_call.1} parent=5 // pred_region
        %s3340 = ssub.s32 %s13, 2
        // Predicated region
        $region41: #{tpu_custom_call.1} parent=39 // pred_check
          %p3341 = pneg %p110
        $region42: #{tpu_custom_call.1} parent=39 // pred_check_branch
          %3343 = sbr.rel (%p3341) target = $region44
        $region43: #{tpu_custom_call.1} parent=39 // pred_region
          %s3344 = sand.u32 %s95, 1
          %s3345 = scalar_lea.sflag [#allocation4], %s3344
          %s3346 = sand.u32 %s95, 1
          %s3347 = smul.addr %s3346, 16
          %s3348 = scalar_lea.vmem [#allocation3], %s3347
          %3349 = dma.done %s3345, 256
        $region44: #{tpu_custom_call.1} parent=39 // pred_fallthru
          _
      $region40: #{tpu_custom_call.1} parent=5 // pred_fallthru
        _
    $region6: #{tpu_custom_call.1} parent=1 // loop_footer
      %s17 = sadd.s32 1, %s13
    $region7: #{tpu_custom_call.1} parent=1 // loop_footer_branch
      %12 = sbr.rel target = $region3
    $region8: #{tpu_custom_call.1} parent=1 // loop_exit
      _
    %3350 = vsyncpa [#allocation4], 1
    %s3351 = scalar_lea.sflag [#allocation4], 1
    %3352 = vsyncpa %s3351, 1

</llo_original>
